<compile_context>
chip_gen: v7x
topology: tpu7x:2x2x1
jax: 0.10.0
libtpu: 0.0.40
codegen_flags: <defaults>
</compile_context>

<pallas_src>
import functools
import math

import jax
import jax.numpy as jnp
from jax.experimental import pallas as pl
from jax.experimental.pallas import tpu as pltpu


# ------------------------------ Pallas kernel -------------------------------


def _lstm_pointwise(gates, c, H2):
    """Gate-major [i|f|g|o] blocks, each 2H wide ([fwd|bwd] lanes)."""
    i = jax.nn.sigmoid(gates[:, 0 * H2:1 * H2])
    f = jax.nn.sigmoid(gates[:, 1 * H2:2 * H2])
    g = jnp.tanh(gates[:, 2 * H2:3 * H2])
    o = jax.nn.sigmoid(gates[:, 3 * H2:4 * H2])
    c_new = f * c + i * g
    h_new = o * jnp.tanh(c_new)
    return h_new, c_new


def _seq2seq_kernel(xf_ref, xb_ref, enc_w_ref, enc_b_ref,
                    x_last_ref, x_tgt_ref, dec_w_ref, dec_b_ref,
                    mlp_w_ref, mlp_b_ref,
                    out_ref, h_sc, c_sc, *, target_len, teacher_force):
    """Grid axis 0 = encoder time (sequential).  Decoder runs at t == T-1.

    xf_ref : (1, B, D)  forward-time slice x[t]
    xb_ref : (1, B, D)  backward-time slice x[T-1-t]
    enc_w  : (2D+2H, 8H) packed encoder weights (gate-major columns), resident
    enc_b  : (1, 8H)     packed encoder bias, resident
    x_last : (B, D)      decoder seed input x[:, -1, :], resident
    x_tgt  : (L, B, D)   teacher-forcing targets, resident
    dec_w  : (D+2H, 8H)  packed decoder weights, resident
    dec_b  : (1, 8H)     packed decoder bias, resident
    mlp_w  : (2H, O), mlp_b: (1, O), resident
    out_ref: (L, B, O)   resident output block, written back once at grid end
    h_sc/c_sc: (B, 2H)   encoder state scratch, layout [fwd | bwd]
    """
    t = pl.program_id(0)

    @pl.when(t == 0)
    def _():
        h_sc[...] = jnp.zeros_like(h_sc)
        c_sc[...] = jnp.zeros_like(c_sc)

    H2 = h_sc.shape[-1]

    # ---- one bidirectional encoder timestep (single MXU pass) ----
    h = h_sc[...]
    c = c_sc[...]
    inp = jnp.concatenate([xf_ref[0], xb_ref[0], h], axis=-1)     # (B, 2D+2H)
    gates = (jnp.dot(inp, enc_w_ref[...], preferred_element_type=jnp.float32)
             + enc_b_ref[...])                                    # (B, 8H)
    h_new, c_new = _lstm_pointwise(gates, c, H2)
    h_sc[...] = h_new
    c_sc[...] = c_new

    # ---- decoder (fused into last grid step; state still in vregs) ----
    @pl.when(t == pl.num_programs(0) - 1)
    def _():
        dec_w = dec_w_ref[...]
        dec_b = dec_b_ref[...]
        mlp_w = mlp_w_ref[...]
        mlp_b = mlp_b_ref[...]

        h_d, c_d = h_new, c_new
        dec_in = x_last_ref[...]                                  # (B, D)
        # target_len is small and static -> full static unroll, static stores.
        for s in range(target_len):
            inp_d = jnp.concatenate([dec_in, h_d], axis=-1)       # (B, D+2H)
            g_d = (jnp.dot(inp_d, dec_w, preferred_element_type=jnp.float32)
                   + dec_b)
            h_d, c_d = _lstm_pointwise(g_d, c_d, H2)              # (B, 2H)
            out = (jnp.dot(h_d, mlp_w, preferred_element_type=jnp.float32)
                   + mlp_b)                                       # (B, O)
            out_ref[s] = out
            if teacher_force:
                dec_in = x_tgt_ref[s]
            else:
                dec_in = out                                      # O == D


# --------------------------- parameter creation -----------------------------


def _init_lstm_direction(key, input_dim, hidden_dim):
    """PyTorch-style uniform(-1/sqrt(H), 1/sqrt(H)) init for one direction."""
    k = 1.0 / math.sqrt(hidden_dim)
    k0, k1, k2, k3 = jax.random.split(key, 4)
    w_ih = jax.random.uniform(k0, (4 * hidden_dim, input_dim),
                              minval=-k, maxval=k, dtype=jnp.float32)
    w_hh = jax.random.uniform(k1, (4 * hidden_dim, hidden_dim),
                              minval=-k, maxval=k, dtype=jnp.float32)
    b_ih = jax.random.uniform(k2, (4 * hidden_dim,), minval=-k, maxval=k,
                              dtype=jnp.float32)
    b_hh = jax.random.uniform(k3, (4 * hidden_dim,), minval=-k, maxval=k,
                              dtype=jnp.float32)
    return w_ih, w_hh, b_ih + b_hh


def _to_gate_major(w, hidden_dim):
    """Columns: dir-major [fwd i,f,g,o | bwd i,f,g,o]
    -> gate-major [i_f,i_b | f_f,f_b | g_f,g_b | o_f,o_b]."""
    r = w.shape[0]
    return (w.reshape(r, 2, 4, hidden_dim)
             .transpose(0, 2, 1, 3)
             .reshape(r, 8 * hidden_dim))


def _pack_encoder(fwd, bwd, input_dim, hidden_dim):
    """Weights for input layout [x_fwd(D), x_bwd(D), h_f(H), h_b(H)]."""
    w_ih_f, w_hh_f, b_f = fwd
    w_ih_b, w_hh_b, b_b = bwd
    zd = jnp.zeros((input_dim, 4 * hidden_dim), jnp.float32)
    zh = jnp.zeros((hidden_dim, 4 * hidden_dim), jnp.float32)
    w = jnp.concatenate([
        jnp.concatenate([w_ih_f.T, zd], axis=1),        # rows: x_fwd
        jnp.concatenate([zd, w_ih_b.T], axis=1),        # rows: x_bwd
        jnp.concatenate([w_hh_f.T, zh], axis=1),        # rows: h_f
        jnp.concatenate([zh, w_hh_b.T], axis=1),        # rows: h_b
    ], axis=0)                                          # (2D+2H, 8H) dir-major
    w = _to_gate_major(w, hidden_dim)
    b = _to_gate_major(jnp.concatenate([b_f, b_b])[None, :], hidden_dim)
    return w, b


def _pack_decoder(fwd, bwd, input_dim, hidden_dim):
    """Weights for input layout [x(D), h_f(H), h_b(H)] (x shared by dirs)."""
    w_ih_f, w_hh_f, b_f = fwd
    w_ih_b, w_hh_b, b_b = bwd
    zh = jnp.zeros((hidden_dim, 4 * hidden_dim), jnp.float32)
    w = jnp.concatenate([
        jnp.concatenate([w_ih_f.T, w_ih_b.T], axis=1),  # rows: x (both dirs)
        jnp.concatenate([w_hh_f.T, zh], axis=1),        # rows: h_f
        jnp.concatenate([zh, w_hh_b.T], axis=1),        # rows: h_b
    ], axis=0)                                          # (D+2H, 8H) dir-major
    w = _to_gate_major(w, hidden_dim)
    b = _to_gate_major(jnp.concatenate([b_f, b_b])[None, :], hidden_dim)
    return w, b


def init_simple_rnn_params(key, input_dim, hidden_dim, output_dim):
    ks = jax.random.split(key, 6)
    enc_f = _init_lstm_direction(ks[0], input_dim, hidden_dim)
    enc_b = _init_lstm_direction(ks[1], input_dim, hidden_dim)
    dec_f = _init_lstm_direction(ks[2], input_dim, hidden_dim)
    dec_b = _init_lstm_direction(ks[3], input_dim, hidden_dim)
    k = 1.0 / math.sqrt(2 * hidden_dim)
    w_mlp = jax.random.uniform(ks[4], (output_dim, 2 * hidden_dim),
                               minval=-k, maxval=k, dtype=jnp.float32)
    b_mlp = jax.random.uniform(ks[5], (output_dim,), minval=-k, maxval=k,
                               dtype=jnp.float32)
    enc_w, enc_bias = _pack_encoder(enc_f, enc_b, input_dim, hidden_dim)
    dec_w, dec_bias = _pack_decoder(dec_f, dec_b, input_dim, hidden_dim)
    return dict(enc_w=enc_w, enc_b=enc_bias,
                dec_w=dec_w, dec_b=dec_bias,
                mlp_w=w_mlp.T, mlp_b=b_mlp[None, :])


# ------------------------------ model forward -------------------------------


def simple_rnn_forward(params, x, x_target, target_len,
                       teacher_forcing_ratio=0.0):
    """x: (B, T, D), x_target: (B, >=target_len, D) -> (B, target_len, O)."""
    B, T, D = x.shape
    H2 = params["mlp_w"].shape[0]                       # 2 * hidden_dim
    O = params["mlp_w"].shape[1]

    x_time = jnp.transpose(x, (1, 0, 2))                # (T, B, D)
    x_tgt_time = jnp.transpose(x_target, (1, 0, 2))[:target_len]
    x_last = x[:, -1, :]                                # (B, D)
    teacher_force = bool(teacher_forcing_ratio >= 1.0)

    kernel = functools.partial(_seq2seq_kernel, target_len=int(target_len),
                               teacher_force=teacher_force)

    grid_spec = pltpu.PrefetchScalarGridSpec(
        num_scalar_prefetch=0,
        grid=(T,),
        in_specs=[
            pl.BlockSpec((1, B, D), lambda t: (t, 0, 0)),          # x[t]
            pl.BlockSpec((1, B, D), lambda t: (T - 1 - t, 0, 0)),  # x[T-1-t]
            pl.BlockSpec(params["enc_w"].shape, lambda t: (0, 0)),
            pl.BlockSpec(params["enc_b"].shape, lambda t: (0, 0)),
            pl.BlockSpec((B, D), lambda t: (0, 0)),                # x_last
            pl.BlockSpec((target_len, B, D), lambda t: (0, 0, 0)), # x_tgt
            pl.BlockSpec(params["dec_w"].shape, lambda t: (0, 0)),
            pl.BlockSpec(params["dec_b"].shape, lambda t: (0, 0)),
            pl.BlockSpec(params["mlp_w"].shape, lambda t: (0, 0)),
            pl.BlockSpec(params["mlp_b"].shape, lambda t: (0, 0)),
        ],
        out_specs=pl.BlockSpec((target_len, B, O), lambda t: (0, 0, 0)),
        scratch_shapes=[pltpu.VMEM((B, H2), jnp.float32),
                        pltpu.VMEM((B, H2), jnp.float32)],
    )
    out_seq = pl.pallas_call(
        kernel,
        grid_spec=grid_spec,
        out_shape=jax.ShapeDtypeStruct((target_len, B, O), jnp.float32),
        compiler_params=pltpu.CompilerParams(
            dimension_semantics=("arbitrary",)),
    )(x_time, x_time, params["enc_w"], params["enc_b"],
      x_last, x_tgt_time, params["dec_w"], params["dec_b"],
      params["mlp_w"], params["mlp_b"])
    return jnp.transpose(out_seq, (1, 0, 2))            # (B, target_len, O)


# ----------------------------------- main ------------------------------------


if __name__ == "__main__":
    # The PyTorch forward writes `out` into a (B, target_len, input_dim)
    # buffer and feeds it back as the next decoder input, so output_dim must
    # equal input_dim.
    batch = 2
    seq_len = 8
    input_dim = 8
    hidden_dim = 32
    output_dim = input_dim
    target_len = 4

    key = jax.random.PRNGKey(0)
    k_params, k_x, k_tgt = jax.random.split(key, 3)

    params = init_simple_rnn_params(k_params, input_dim, hidden_dim, output_dim)
    x = jax.random.normal(k_x, (batch, seq_len, input_dim), dtype=jnp.float32)
    x_target = jax.random.normal(k_tgt, (batch, target_len, input_dim),
                                 dtype=jnp.float32)

    fwd = jax.jit(simple_rnn_forward, static_argnums=(3, 4))
    out = fwd(params, x, x_target, target_len, 0.0)
    out = jax.block_until_ready(out)
    assert out.shape == (batch, target_len, output_dim)
    assert bool(jnp.all(jnp.isfinite(out)))
    print("KERNEL_OK")
</pallas_src>

<mosaic_0001>
module attributes {stable_mosaic.version = 11 : i64} {
  func.func @_seq2seq_kernel(%arg0: i32, %arg1: memref<1x2x8xf32, #tpu.memory_space<vmem>>, %arg2: memref<1x2x8xf32, #tpu.memory_space<vmem>>, %arg3: memref<80x256xf32, #tpu.memory_space<vmem>>, %arg4: memref<1x256xf32, #tpu.memory_space<vmem>>, %arg5: memref<2x8xf32, #tpu.memory_space<vmem>>, %arg6: memref<4x2x8xf32, #tpu.memory_space<vmem>>, %arg7: memref<72x256xf32, #tpu.memory_space<vmem>>, %arg8: memref<1x256xf32, #tpu.memory_space<vmem>>, %arg9: memref<64x8xf32, #tpu.memory_space<vmem>>, %arg10: memref<1x8xf32, #tpu.memory_space<vmem>>, %arg11: memref<4x2x8xf32, #tpu.memory_space<vmem>>, %arg12: memref<2x64xf32, #tpu.memory_space<vmem>>, %arg13: memref<2x64xf32, #tpu.memory_space<vmem>>) attributes {dimension_semantics = [#tpu.dimension_semantics<arbitrary>], iteration_bounds = array<i64: 8>, scalar_prefetch = 0 : i64, scratch_operands = 2 : i64, tpu.core_type = #tpu.core_type<tc>, window_params = [{transform_indices = @transform_0, window_bounds = array<i64: 1, 2, 8>}, {transform_indices = @transform_1, window_bounds = array<i64: 1, 2, 8>}, {pipeline_mode = #tpu.pipeline_mode<synchronous>, transform_indices = @transform_2, window_bounds = array<i64: 80, 256>}, {pipeline_mode = #tpu.pipeline_mode<synchronous>, transform_indices = @transform_3, window_bounds = array<i64: 1, 256>}, {pipeline_mode = #tpu.pipeline_mode<synchronous>, transform_indices = @transform_4, window_bounds = array<i64: 2, 8>}, {pipeline_mode = #tpu.pipeline_mode<synchronous>, transform_indices = @transform_5, window_bounds = array<i64: 4, 2, 8>}, {pipeline_mode = #tpu.pipeline_mode<synchronous>, transform_indices = @transform_6, window_bounds = array<i64: 72, 256>}, {pipeline_mode = #tpu.pipeline_mode<synchronous>, transform_indices = @transform_7, window_bounds = array<i64: 1, 256>}, {pipeline_mode = #tpu.pipeline_mode<synchronous>, transform_indices = @transform_8, window_bounds = array<i64: 64, 8>}, {pipeline_mode = #tpu.pipeline_mode<synchronous>, transform_indices = @transform_9, window_bounds = array<i64: 1, 8>}, {pipeline_mode = #tpu.pipeline_mode<synchronous>, transform_indices = @transform_10, window_bounds = array<i64: 4, 2, 8>}]} {
    %c0_i32 = arith.constant 0 : i32
    %0 = arith.cmpi eq, %arg0, %c0_i32 : i32
    %1 = arith.extui %0 : i1 to i32
    %c0_i32_0 = arith.constant 0 : i32
    %2 = arith.cmpi ne, %1, %c0_i32_0 : i32
    scf.if %2 {
      %cst_22 = arith.constant 0.000000e+00 : f32
      %45 = vector.broadcast %cst_22 : f32 to vector<2x64xf32>
      %c0_23 = arith.constant 0 : index
      %c0_24 = arith.constant 0 : index
      %46 = vector.load %arg12[%c0_23, %c0_24] : memref<2x64xf32, #tpu.memory_space<vmem>>, vector<2x64xf32>
      tpu.vector_store %arg12[%c0_23, %c0_24], %45 {strides = array<i32>} : memref<2x64xf32, #tpu.memory_space<vmem>>, vector<2x64xf32>,
      %cst_25 = arith.constant 0.000000e+00 : f32
      %47 = vector.broadcast %cst_25 : f32 to vector<2x64xf32>
      %c0_26 = arith.constant 0 : index
      %c0_27 = arith.constant 0 : index
      %48 = vector.load %arg13[%c0_26, %c0_27] : memref<2x64xf32, #tpu.memory_space<vmem>>, vector<2x64xf32>
      tpu.vector_store %arg13[%c0_26, %c0_27], %47 {strides = array<i32>} : memref<2x64xf32, #tpu.memory_space<vmem>>, vector<2x64xf32>,
    } else {
    }
    %c0 = arith.constant 0 : index
    %c0_1 = arith.constant 0 : index
    %3 = vector.load %arg12[%c0, %c0_1] : memref<2x64xf32, #tpu.memory_space<vmem>>, vector<2x64xf32>
    %c0_2 = arith.constant 0 : index
    %c0_3 = arith.constant 0 : index
    %4 = vector.load %arg13[%c0_2, %c0_3] : memref<2x64xf32, #tpu.memory_space<vmem>>, vector<2x64xf32>
    %c0_4 = arith.constant 0 : index
    %c0_5 = arith.constant 0 : index
    %c0_6 = arith.constant 0 : index
    %5 = vector.load %arg1[%c0_4, %c0_5, %c0_6] : memref<1x2x8xf32, #tpu.memory_space<vmem>>, vector<1x2x8xf32>
    %6 = vector.shape_cast %5 : vector<1x2x8xf32> to vector<2x8xf32>
    %c0_7 = arith.constant 0 : index
    %c0_8 = arith.constant 0 : index
    %c0_9 = arith.constant 0 : index
    %7 = vector.load %arg2[%c0_7, %c0_8, %c0_9] : memref<1x2x8xf32, #tpu.memory_space<vmem>>, vector<1x2x8xf32>
    %8 = vector.shape_cast %7 : vector<1x2x8xf32> to vector<2x8xf32>
    %9 = tpu.concatenate %6, %8, %3 in 1 : vector<2x8xf32>, vector<2x8xf32>, vector<2x64xf32> -> vector<2x80xf32>
    %c0_10 = arith.constant 0 : index
    %c0_11 = arith.constant 0 : index
    %10 = vector.load %arg3[%c0_10, %c0_11] : memref<80x256xf32, #tpu.memory_space<vmem>>, vector<80x256xf32>
    %cst = arith.constant dense<0.000000e+00> : vector<2x256xf32>
    %11 = tpu.matmul %9, %10, %cst {dimension_numbers = #tpu.dot_dimension_numbers<[1], [0], [0], [1], [0, 0, 1, 1], [], []>} : vector<2x80xf32>, vector<80x256xf32>, vector<2x256xf32> -> vector<2x256xf32>
    %c0_12 = arith.constant 0 : index
    %c0_13 = arith.constant 0 : index
    %12 = vector.load %arg4[%c0_12, %c0_13] : memref<1x256xf32, #tpu.memory_space<vmem>>, vector<1x256xf32>
    %13 = vector.broadcast %12 : vector<1x256xf32> to vector<2x256xf32>
    %14 = arith.addf %11, %13 : vector<2x256xf32>
    %15 = vector.extract_strided_slice %14 {offsets = [0, 0], sizes = [2, 64], strides = [1, 1]} : vector<2x256xf32> to vector<2x64xf32>
    %16 = arith.negf %15 : vector<2x64xf32>
    %17 = math.exp %16 : vector<2x64xf32>
    %cst_14 = arith.constant 1.000000e+00 : f32
    %18 = vector.broadcast %cst_14 : f32 to vector<2x64xf32>
    %19 = arith.addf %18, %17 : vector<2x64xf32>
    %20 = arith.divf %18, %19 : vector<2x64xf32>
    %21 = vector.extract_strided_slice %14 {offsets = [0, 64], sizes = [2, 64], strides = [1, 1]} : vector<2x256xf32> to vector<2x64xf32>
    %22 = arith.negf %21 : vector<2x64xf32>
    %23 = math.exp %22 : vector<2x64xf32>
    %cst_15 = arith.constant 1.000000e+00 : f32
    %24 = vector.broadcast %cst_15 : f32 to vector<2x64xf32>
    %25 = arith.addf %24, %23 : vector<2x64xf32>
    %26 = arith.divf %24, %25 : vector<2x64xf32>
    %27 = vector.extract_strided_slice %14 {offsets = [0, 128], sizes = [2, 64], strides = [1, 1]} : vector<2x256xf32> to vector<2x64xf32>
    %28 = math.tanh %27 : vector<2x64xf32>
    %29 = vector.extract_strided_slice %14 {offsets = [0, 192], sizes = [2, 64], strides = [1, 1]} : vector<2x256xf32> to vector<2x64xf32>
    %30 = arith.negf %29 : vector<2x64xf32>
    %31 = math.exp %30 : vector<2x64xf32>
    %cst_16 = arith.constant 1.000000e+00 : f32
    %32 = vector.broadcast %cst_16 : f32 to vector<2x64xf32>
    %33 = arith.addf %32, %31 : vector<2x64xf32>
    %34 = arith.divf %32, %33 : vector<2x64xf32>
    %35 = arith.mulf %26, %4 : vector<2x64xf32>
    %36 = arith.mulf %20, %28 : vector<2x64xf32>
    %37 = arith.addf %35, %36 : vector<2x64xf32>
    %38 = math.tanh %37 : vector<2x64xf32>
    %39 = arith.mulf %34, %38 : vector<2x64xf32>
    %c0_17 = arith.constant 0 : index
    %c0_18 = arith.constant 0 : index
    %40 = vector.load %arg12[%c0_17, %c0_18] : memref<2x64xf32, #tpu.memory_space<vmem>>, vector<2x64xf32>
    tpu.vector_store %arg12[%c0_17, %c0_18], %39 {strides = array<i32>} : memref<2x64xf32, #tpu.memory_space<vmem>>, vector<2x64xf32>,
    %c0_19 = arith.constant 0 : index
    %c0_20 = arith.constant 0 : index
    %41 = vector.load %arg13[%c0_19, %c0_20] : memref<2x64xf32, #tpu.memory_space<vmem>>, vector<2x64xf32>
    tpu.vector_store %arg13[%c0_19, %c0_20], %37 {strides = array<i32>} : memref<2x64xf32, #tpu.memory_space<vmem>>, vector<2x64xf32>,
    %c7_i32 = arith.constant 7 : i32
    %42 = arith.cmpi eq, %arg0, %c7_i32 : i32
    %43 = arith.extui %42 : i1 to i32
    %c0_i32_21 = arith.constant 0 : i32
    %44 = arith.cmpi ne, %43, %c0_i32_21 : i32
    scf.if %44 {
      %c0_22 = arith.constant 0 : index
      %c0_23 = arith.constant 0 : index
      %45 = vector.load %arg7[%c0_22, %c0_23] : memref<72x256xf32, #tpu.memory_space<vmem>>, vector<72x256xf32>
      %c0_24 = arith.constant 0 : index
      %c0_25 = arith.constant 0 : index
      %46 = vector.load %arg8[%c0_24, %c0_25] : memref<1x256xf32, #tpu.memory_space<vmem>>, vector<1x256xf32>
      %c0_26 = arith.constant 0 : index
      %c0_27 = arith.constant 0 : index
      %47 = vector.load %arg9[%c0_26, %c0_27] : memref<64x8xf32, #tpu.memory_space<vmem>>, vector<64x8xf32>
      %c0_28 = arith.constant 0 : index
      %c0_29 = arith.constant 0 : index
      %48 = vector.load %arg10[%c0_28, %c0_29] : memref<1x8xf32, #tpu.memory_space<vmem>>, vector<1x8xf32>
      %c0_30 = arith.constant 0 : index
      %c0_31 = arith.constant 0 : index
      %49 = vector.load %arg5[%c0_30, %c0_31] : memref<2x8xf32, #tpu.memory_space<vmem>>, vector<2x8xf32>
      %50 = tpu.concatenate %49, %39 in 1 : vector<2x8xf32>, vector<2x64xf32> -> vector<2x72xf32>
      %cst_32 = arith.constant dense<0.000000e+00> : vector<2x256xf32>
      %51 = tpu.matmul %50, %45, %cst_32 {dimension_numbers = #tpu.dot_dimension_numbers<[1], [0], [0], [1], [0, 0, 1, 1], [], []>} : vector<2x72xf32>, vector<72x256xf32>, vector<2x256xf32> -> vector<2x256xf32>
      %52 = vector.broadcast %46 : vector<1x256xf32> to vector<2x256xf32>
      %53 = arith.addf %51, %52 : vector<2x256xf32>
      %54 = vector.extract_strided_slice %53 {offsets = [0, 0], sizes = [2, 64], strides = [1, 1]} : vector<2x256xf32> to vector<2x64xf32>
      %55 = arith.negf %54 : vector<2x64xf32>
      %56 = math.exp %55 : vector<2x64xf32>
      %cst_33 = arith.constant 1.000000e+00 : f32
      %57 = vector.broadcast %cst_33 : f32 to vector<2x64xf32>
      %58 = arith.addf %57, %56 : vector<2x64xf32>
      %59 = arith.divf %57, %58 : vector<2x64xf32>
      %60 = vector.extract_strided_slice %53 {offsets = [0, 64], sizes = [2, 64], strides = [1, 1]} : vector<2x256xf32> to vector<2x64xf32>
      %61 = arith.negf %60 : vector<2x64xf32>
      %62 = math.exp %61 : vector<2x64xf32>
      %cst_34 = arith.constant 1.000000e+00 : f32
      %63 = vector.broadcast %cst_34 : f32 to vector<2x64xf32>
      %64 = arith.addf %63, %62 : vector<2x64xf32>
      %65 = arith.divf %63, %64 : vector<2x64xf32>
      %66 = vector.extract_strided_slice %53 {offsets = [0, 128], sizes = [2, 64], strides = [1, 1]} : vector<2x256xf32> to vector<2x64xf32>
      %67 = math.tanh %66 : vector<2x64xf32>
      %68 = vector.extract_strided_slice %53 {offsets = [0, 192], sizes = [2, 64], strides = [1, 1]} : vector<2x256xf32> to vector<2x64xf32>
      %69 = arith.negf %68 : vector<2x64xf32>
      %70 = math.exp %69 : vector<2x64xf32>
      %cst_35 = arith.constant 1.000000e+00 : f32
      %71 = vector.broadcast %cst_35 : f32 to vector<2x64xf32>
      %72 = arith.addf %71, %70 : vector<2x64xf32>
      %73 = arith.divf %71, %72 : vector<2x64xf32>
      %74 = arith.mulf %65, %37 : vector<2x64xf32>
      %75 = arith.mulf %59, %67 : vector<2x64xf32>
      %76 = arith.addf %74, %75 : vector<2x64xf32>
      %77 = math.tanh %76 : vector<2x64xf32>
      %78 = arith.mulf %73, %77 : vector<2x64xf32>
      %cst_36 = arith.constant dense<0.000000e+00> : vector<2x8xf32>
      %79 = tpu.matmul %78, %47, %cst_36 {dimension_numbers = #tpu.dot_dimension_numbers<[1], [0], [0], [1], [0, 0, 1, 1], [], []>} : vector<2x64xf32>, vector<64x8xf32>, vector<2x8xf32> -> vector<2x8xf32>
      %80 = vector.broadcast %48 : vector<1x8xf32> to vector<2x8xf32>
      %81 = arith.addf %79, %80 : vector<2x8xf32>
      %c0_37 = arith.constant 0 : index
      %c0_38 = arith.constant 0 : index
      %c0_39 = arith.constant 0 : index
      %82 = vector.load %arg11[%c0_37, %c0_38, %c0_39] : memref<4x2x8xf32, #tpu.memory_space<vmem>>, vector<1x2x8xf32>
      %83 = vector.shape_cast %82 : vector<1x2x8xf32> to vector<2x8xf32>
      %84 = vector.shape_cast %81 : vector<2x8xf32> to vector<1x2x8xf32>
      tpu.vector_store %arg11[%c0_37, %c0_38, %c0_39], %84 {strides = array<i32>} : memref<4x2x8xf32, #tpu.memory_space<vmem>>, vector<1x2x8xf32>,
      %85 = tpu.concatenate %81, %78 in 1 : vector<2x8xf32>, vector<2x64xf32> -> vector<2x72xf32>
      %cst_40 = arith.constant dense<0.000000e+00> : vector<2x256xf32>
      %86 = tpu.matmul %85, %45, %cst_40 {dimension_numbers = #tpu.dot_dimension_numbers<[1], [0], [0], [1], [0, 0, 1, 1], [], []>} : vector<2x72xf32>, vector<72x256xf32>, vector<2x256xf32> -> vector<2x256xf32>
      %87 = vector.broadcast %46 : vector<1x256xf32> to vector<2x256xf32>
      %88 = arith.addf %86, %87 : vector<2x256xf32>
      %89 = vector.extract_strided_slice %88 {offsets = [0, 0], sizes = [2, 64], strides = [1, 1]} : vector<2x256xf32> to vector<2x64xf32>
      %90 = arith.negf %89 : vector<2x64xf32>
      %91 = math.exp %90 : vector<2x64xf32>
      %cst_41 = arith.constant 1.000000e+00 : f32
      %92 = vector.broadcast %cst_41 : f32 to vector<2x64xf32>
      %93 = arith.addf %92, %91 : vector<2x64xf32>
      %94 = arith.divf %92, %93 : vector<2x64xf32>
      %95 = vector.extract_strided_slice %88 {offsets = [0, 64], sizes = [2, 64], strides = [1, 1]} : vector<2x256xf32> to vector<2x64xf32>
      %96 = arith.negf %95 : vector<2x64xf32>
      %97 = math.exp %96 : vector<2x64xf32>
      %cst_42 = arith.constant 1.000000e+00 : f32
      %98 = vector.broadcast %cst_42 : f32 to vector<2x64xf32>
      %99 = arith.addf %98, %97 : vector<2x64xf32>
      %100 = arith.divf %98, %99 : vector<2x64xf32>
      %101 = vector.extract_strided_slice %88 {offsets = [0, 128], sizes = [2, 64], strides = [1, 1]} : vector<2x256xf32> to vector<2x64xf32>
      %102 = math.tanh %101 : vector<2x64xf32>
      %103 = vector.extract_strided_slice %88 {offsets = [0, 192], sizes = [2, 64], strides = [1, 1]} : vector<2x256xf32> to vector<2x64xf32>
      %104 = arith.negf %103 : vector<2x64xf32>
      %105 = math.exp %104 : vector<2x64xf32>
      %cst_43 = arith.constant 1.000000e+00 : f32
      %106 = vector.broadcast %cst_43 : f32 to vector<2x64xf32>
      %107 = arith.addf %106, %105 : vector<2x64xf32>
      %108 = arith.divf %106, %107 : vector<2x64xf32>
      %109 = arith.mulf %100, %76 : vector<2x64xf32>
      %110 = arith.mulf %94, %102 : vector<2x64xf32>
      %111 = arith.addf %109, %110 : vector<2x64xf32>
      %112 = math.tanh %111 : vector<2x64xf32>
      %113 = arith.mulf %108, %112 : vector<2x64xf32>
      %cst_44 = arith.constant dense<0.000000e+00> : vector<2x8xf32>
      %114 = tpu.matmul %113, %47, %cst_44 {dimension_numbers = #tpu.dot_dimension_numbers<[1], [0], [0], [1], [0, 0, 1, 1], [], []>} : vector<2x64xf32>, vector<64x8xf32>, vector<2x8xf32> -> vector<2x8xf32>
      %115 = vector.broadcast %48 : vector<1x8xf32> to vector<2x8xf32>
      %116 = arith.addf %114, %115 : vector<2x8xf32>
      %c1 = arith.constant 1 : index
      %c0_45 = arith.constant 0 : index
      %c0_46 = arith.constant 0 : index
      %117 = vector.load %arg11[%c1, %c0_45, %c0_46] : memref<4x2x8xf32, #tpu.memory_space<vmem>>, vector<1x2x8xf32>
      %118 = vector.shape_cast %117 : vector<1x2x8xf32> to vector<2x8xf32>
      %119 = vector.shape_cast %116 : vector<2x8xf32> to vector<1x2x8xf32>
      tpu.vector_store %arg11[%c1, %c0_45, %c0_46], %119 {strides = array<i32>} : memref<4x2x8xf32, #tpu.memory_space<vmem>>, vector<1x2x8xf32>,
      %120 = tpu.concatenate %116, %113 in 1 : vector<2x8xf32>, vector<2x64xf32> -> vector<2x72xf32>
      %cst_47 = arith.constant dense<0.000000e+00> : vector<2x256xf32>
      %121 = tpu.matmul %120, %45, %cst_47 {dimension_numbers = #tpu.dot_dimension_numbers<[1], [0], [0], [1], [0, 0, 1, 1], [], []>} : vector<2x72xf32>, vector<72x256xf32>, vector<2x256xf32> -> vector<2x256xf32>
      %122 = vector.broadcast %46 : vector<1x256xf32> to vector<2x256xf32>
      %123 = arith.addf %121, %122 : vector<2x256xf32>
      %124 = vector.extract_strided_slice %123 {offsets = [0, 0], sizes = [2, 64], strides = [1, 1]} : vector<2x256xf32> to vector<2x64xf32>
      %125 = arith.negf %124 : vector<2x64xf32>
      %126 = math.exp %125 : vector<2x64xf32>
      %cst_48 = arith.constant 1.000000e+00 : f32
      %127 = vector.broadcast %cst_48 : f32 to vector<2x64xf32>
      %128 = arith.addf %127, %126 : vector<2x64xf32>
      %129 = arith.divf %127, %128 : vector<2x64xf32>
      %130 = vector.extract_strided_slice %123 {offsets = [0, 64], sizes = [2, 64], strides = [1, 1]} : vector<2x256xf32> to vector<2x64xf32>
      %131 = arith.negf %130 : vector<2x64xf32>
      %132 = math.exp %131 : vector<2x64xf32>
      %cst_49 = arith.constant 1.000000e+00 : f32
      %133 = vector.broadcast %cst_49 : f32 to vector<2x64xf32>
      %134 = arith.addf %133, %132 : vector<2x64xf32>
      %135 = arith.divf %133, %134 : vector<2x64xf32>
      %136 = vector.extract_strided_slice %123 {offsets = [0, 128], sizes = [2, 64], strides = [1, 1]} : vector<2x256xf32> to vector<2x64xf32>
      %137 = math.tanh %136 : vector<2x64xf32>
      %138 = vector.extract_strided_slice %123 {offsets = [0, 192], sizes = [2, 64], strides = [1, 1]} : vector<2x256xf32> to vector<2x64xf32>
      %139 = arith.negf %138 : vector<2x64xf32>
      %140 = math.exp %139 : vector<2x64xf32>
      %cst_50 = arith.constant 1.000000e+00 : f32
      %141 = vector.broadcast %cst_50 : f32 to vector<2x64xf32>
      %142 = arith.addf %141, %140 : vector<2x64xf32>
      %143 = arith.divf %141, %142 : vector<2x64xf32>
      %144 = arith.mulf %135, %111 : vector<2x64xf32>
      %145 = arith.mulf %129, %137 : vector<2x64xf32>
      %146 = arith.addf %144, %145 : vector<2x64xf32>
      %147 = math.tanh %146 : vector<2x64xf32>
      %148 = arith.mulf %143, %147 : vector<2x64xf32>
      %cst_51 = arith.constant dense<0.000000e+00> : vector<2x8xf32>
      %149 = tpu.matmul %148, %47, %cst_51 {dimension_numbers = #tpu.dot_dimension_numbers<[1], [0], [0], [1], [0, 0, 1, 1], [], []>} : vector<2x64xf32>, vector<64x8xf32>, vector<2x8xf32> -> vector<2x8xf32>
      %150 = vector.broadcast %48 : vector<1x8xf32> to vector<2x8xf32>
      %151 = arith.addf %149, %150 : vector<2x8xf32>
      %c2 = arith.constant 2 : index
      %c0_52 = arith.constant 0 : index
      %c0_53 = arith.constant 0 : index
      %152 = vector.load %arg11[%c2, %c0_52, %c0_53] : memref<4x2x8xf32, #tpu.memory_space<vmem>>, vector<1x2x8xf32>
      %153 = vector.shape_cast %152 : vector<1x2x8xf32> to vector<2x8xf32>
      %154 = vector.shape_cast %151 : vector<2x8xf32> to vector<1x2x8xf32>
      tpu.vector_store %arg11[%c2, %c0_52, %c0_53], %154 {strides = array<i32>} : memref<4x2x8xf32, #tpu.memory_space<vmem>>, vector<1x2x8xf32>,
      %155 = tpu.concatenate %151, %148 in 1 : vector<2x8xf32>, vector<2x64xf32> -> vector<2x72xf32>
      %cst_54 = arith.constant dense<0.000000e+00> : vector<2x256xf32>
      %156 = tpu.matmul %155, %45, %cst_54 {dimension_numbers = #tpu.dot_dimension_numbers<[1], [0], [0], [1], [0, 0, 1, 1], [], []>} : vector<2x72xf32>, vector<72x256xf32>, vector<2x256xf32> -> vector<2x256xf32>
      %157 = vector.broadcast %46 : vector<1x256xf32> to vector<2x256xf32>
      %158 = arith.addf %156, %157 : vector<2x256xf32>
      %159 = vector.extract_strided_slice %158 {offsets = [0, 0], sizes = [2, 64], strides = [1, 1]} : vector<2x256xf32> to vector<2x64xf32>
      %160 = arith.negf %159 : vector<2x64xf32>
      %161 = math.exp %160 : vector<2x64xf32>
      %cst_55 = arith.constant 1.000000e+00 : f32
      %162 = vector.broadcast %cst_55 : f32 to vector<2x64xf32>
      %163 = arith.addf %162, %161 : vector<2x64xf32>
      %164 = arith.divf %162, %163 : vector<2x64xf32>
      %165 = vector.extract_strided_slice %158 {offsets = [0, 64], sizes = [2, 64], strides = [1, 1]} : vector<2x256xf32> to vector<2x64xf32>
      %166 = arith.negf %165 : vector<2x64xf32>
      %167 = math.exp %166 : vector<2x64xf32>
      %cst_56 = arith.constant 1.000000e+00 : f32
      %168 = vector.broadcast %cst_56 : f32 to vector<2x64xf32>
      %169 = arith.addf %168, %167 : vector<2x64xf32>
      %170 = arith.divf %168, %169 : vector<2x64xf32>
      %171 = vector.extract_strided_slice %158 {offsets = [0, 128], sizes = [2, 64], strides = [1, 1]} : vector<2x256xf32> to vector<2x64xf32>
      %172 = math.tanh %171 : vector<2x64xf32>
      %173 = vector.extract_strided_slice %158 {offsets = [0, 192], sizes = [2, 64], strides = [1, 1]} : vector<2x256xf32> to vector<2x64xf32>
      %174 = arith.negf %173 : vector<2x64xf32>
      %175 = math.exp %174 : vector<2x64xf32>
      %cst_57 = arith.constant 1.000000e+00 : f32
      %176 = vector.broadcast %cst_57 : f32 to vector<2x64xf32>
      %177 = arith.addf %176, %175 : vector<2x64xf32>
      %178 = arith.divf %176, %177 : vector<2x64xf32>
      %179 = arith.mulf %170, %146 : vector<2x64xf32>
      %180 = arith.mulf %164, %172 : vector<2x64xf32>
      %181 = arith.addf %179, %180 : vector<2x64xf32>
      %182 = math.tanh %181 : vector<2x64xf32>
      %183 = arith.mulf %178, %182 : vector<2x64xf32>
      %cst_58 = arith.constant dense<0.000000e+00> : vector<2x8xf32>
      %184 = tpu.matmul %183, %47, %cst_58 {dimension_numbers = #tpu.dot_dimension_numbers<[1], [0], [0], [1], [0, 0, 1, 1], [], []>} : vector<2x64xf32>, vector<64x8xf32>, vector<2x8xf32> -> vector<2x8xf32>
      %185 = vector.broadcast %48 : vector<1x8xf32> to vector<2x8xf32>
      %186 = arith.addf %184, %185 : vector<2x8xf32>
      %c3 = arith.constant 3 : index
      %c0_59 = arith.constant 0 : index
      %c0_60 = arith.constant 0 : index
      %187 = vector.load %arg11[%c3, %c0_59, %c0_60] : memref<4x2x8xf32, #tpu.memory_space<vmem>>, vector<1x2x8xf32>
      %188 = vector.shape_cast %187 : vector<1x2x8xf32> to vector<2x8xf32>
      %189 = vector.shape_cast %186 : vector<2x8xf32> to vector<1x2x8xf32>
      tpu.vector_store %arg11[%c3, %c0_59, %c0_60], %189 {strides = array<i32>} : memref<4x2x8xf32, #tpu.memory_space<vmem>>, vector<1x2x8xf32>,
    } else {
    }
    return
  }
  func.func @transform_0(%arg0: i32) -> (i32, i32, i32) {
    %c0_i32 = arith.constant 0 : i32
    %c0_i32_0 = arith.constant 0 : i32
    %c0_i32_1 = arith.constant 0 : i32
    return %arg0, %c0_i32, %c0_i32_0 : i32, i32, i32
  }
  func.func @transform_1(%arg0: i32) -> (i32, i32, i32) {
    %c7_i32 = arith.constant 7 : i32
    %0 = arith.subi %c7_i32, %arg0 : i32
    %c0_i32 = arith.constant 0 : i32
    %c0_i32_0 = arith.constant 0 : i32
    %c0_i32_1 = arith.constant 0 : i32
    return %0, %c0_i32, %c0_i32_0 : i32, i32, i32
  }
  func.func @transform_2(%arg0: i32) -> (i32, i32) {
    %c0_i32 = arith.constant 0 : i32
    %c0_i32_0 = arith.constant 0 : i32
    %c0_i32_1 = arith.constant 0 : i32
    return %c0_i32, %c0_i32_0 : i32, i32
  }
  func.func @transform_3(%arg0: i32) -> (i32, i32) {
    %c0_i32 = arith.constant 0 : i32
    %c0_i32_0 = arith.constant 0 : i32
    %c0_i32_1 = arith.constant 0 : i32
    return %c0_i32, %c0_i32_0 : i32, i32
  }
  func.func @transform_4(%arg0: i32) -> (i32, i32) {
    %c0_i32 = arith.constant 0 : i32
    %c0_i32_0 = arith.constant 0 : i32
    %c0_i32_1 = arith.constant 0 : i32
    return %c0_i32, %c0_i32_0 : i32, i32
  }
  func.func @transform_5(%arg0: i32) -> (i32, i32, i32) {
    %c0_i32 = arith.constant 0 : i32
    %c0_i32_0 = arith.constant 0 : i32
    %c0_i32_1 = arith.constant 0 : i32
    %c0_i32_2 = arith.constant 0 : i32
    return %c0_i32, %c0_i32_0, %c0_i32_1 : i32, i32, i32
  }
  func.func @transform_6(%arg0: i32) -> (i32, i32) {
    %c0_i32 = arith.constant 0 : i32
    %c0_i32_0 = arith.constant 0 : i32
    %c0_i32_1 = arith.constant 0 : i32
    return %c0_i32, %c0_i32_0 : i32, i32
  }
  func.func @transform_7(%arg0: i32) -> (i32, i32) {
    %c0_i32 = arith.constant 0 : i32
    %c0_i32_0 = arith.constant 0 : i32
    %c0_i32_1 = arith.constant 0 : i32
    return %c0_i32, %c0_i32_0 : i32, i32
  }
  func.func @transform_8(%arg0: i32) -> (i32, i32) {
    %c0_i32 = arith.constant 0 : i32
    %c0_i32_0 = arith.constant 0 : i32
    %c0_i32_1 = arith.constant 0 : i32
    return %c0_i32, %c0_i32_0 : i32, i32
  }
  func.func @transform_9(%arg0: i32) -> (i32, i32) {
    %c0_i32 = arith.constant 0 : i32
    %c0_i32_0 = arith.constant 0 : i32
    %c0_i32_1 = arith.constant 0 : i32
    return %c0_i32, %c0_i32_0 : i32, i32
  }
  func.func @transform_10(%arg0: i32) -> (i32, i32, i32) {
    %c0_i32 = arith.constant 0 : i32
    %c0_i32_0 = arith.constant 0 : i32
    %c0_i32_1 = arith.constant 0 : i32
    %c0_i32_2 = arith.constant 0 : i32
    return %c0_i32, %c0_i32_0, %c0_i32_1 : i32, i32, i32
  }
}

</mosaic_0001>

<llo_original>
// kernel: simple_rnn_forward.1
$region0: #{simple_rnn_forward.1}
  #allocation0 [shape = 'u32[]', space=smem, size = 0x4, offset = 0x4, fixed_abs, tag = 'smem constant byte address 0x4 - core index']
  #allocation1 [shape = 'u32[144,128]{1,0:T(1,128)}', space=vmem, size = 0x12000, scoped, tag = 'internal scratch']
  #allocation2 [shape = 'f32[2,64]{1,0:T(2,128)}', space=vmem, size = 0x400, scoped, tag = 'scratch operand']
  #allocation3 [shape = 'f32[2,64]{1,0:T(2,128)}', space=vmem, size = 0x400, scoped, tag = 'scratch operand']
  %s0 = inlined_call_operand.vmem [shape: f32[8,2,8], index: 0, kind: input, shape index: {}, may-alias: {0,1}]
  %s1 = inlined_call_operand.vmem [shape: f32[8,2,8], index: 1, kind: input, shape index: {}, may-alias: {0,1}]
  %s2 = inlined_call_operand.hbm [shape: f32[80,256], index: 2, kind: input, shape index: {}]
  %s3 = inlined_call_operand.vmem [shape: f32[1,256], index: 3, kind: input, shape index: {}]
  %s4 = inlined_call_operand.vmem [shape: f32[2,8], index: 4, kind: input, shape index: {}]
  %s5 = inlined_call_operand.vmem [shape: f32[4,2,8], index: 5, kind: input, shape index: {}]
  %s6 = inlined_call_operand.hbm [shape: f32[72,256], index: 6, kind: input, shape index: {}]
  %s7 = inlined_call_operand.vmem [shape: f32[1,256], index: 7, kind: input, shape index: {}]
  %s8 = inlined_call_operand.vmem [shape: f32[64,8], index: 8, kind: input, shape index: {}]
  %s9 = inlined_call_operand.vmem [shape: f32[1,8], index: 9, kind: input, shape index: {}]
  %s10 = inlined_call_operand.vmem [shape: f32[4,2,8], index: 10, kind: output, shape index: {}]
  %s11 = sld [smem:[#allocation0]]
  $region89: #{simple_rnn_forward.1} parent=0
    _
  %s13 = ssub.s32 1, %s11
  %s14 = scalar_select 0, %s13, %s11
  $region1: #{simple_rnn_forward.1} parent=0
    #allocation4 [shape = 'u8[81920]{0}', space=vmem, size = 0x14000, scoped, tag = 'input window, operand 2, single buffered']
    #allocation5 [shape = 's32[2]{0}', space=sflag, size = 0x8, scoped, tag = 'scoped memory for simple_rnn_forward.1']
    #allocation6 [shape = 'u8[73728]{0}', space=vmem, size = 0x12000, scoped, tag = 'input window, operand 6, single buffered']
    #allocation7 [shape = 's32[1]{0}', space=sflag, size = 0x4, scoped, tag = 'scoped memory for simple_rnn_forward.1']
    %15 = vsyncpa [#allocation5], 0
    %16 = vsyncpa [#allocation7], 0
    loop: start=0, step=1, limit=10
    $region2: #{simple_rnn_forward.1} parent=1 // loop_pre_header
      _
    $region3: #{simple_rnn_forward.1} parent=1 // loop_header
      %s18 = sphi 0, %s22
      %p19 = scmp.ge.s32.totalorder %s18, 10
      %s28 = sphi 0, %s30
      %s31 = sphi 0, %s28
      %s32 = sphi 0, %s31
      %s48 = sphi 0, %s32
      %s56 = sphi 0, %s58
      %s59 = sphi 0, %s56
      %s60 = sphi 0, %s59
      %s76 = sphi 0, %s60
      %s80 = sphi 0, %s80
      %s82 = sphi 0, %s80
      %s83 = sphi 0, %s82
      %s97 = sphi 0, %s83
      %s101 = sphi 0, %s101
      %s103 = sphi 0, %s101
      %s104 = sphi 0, %s103
      %s118 = sphi 0, %s104
      %s122 = sphi 0, %s122
      %s124 = sphi 0, %s122
      %s125 = sphi 0, %s124
      %s139 = sphi 0, %s125
      %s143 = sphi 0, %s143
      %s145 = sphi 0, %s143
      %s146 = sphi 0, %s145
      %s160 = sphi 0, %s146
      %s164 = sphi 0, %s164
      %s166 = sphi 0, %s164
      %s167 = sphi 0, %s166
      %s181 = sphi 0, %s167
      %s185 = sphi 0, %s185
      %s187 = sphi 0, %s185
      %s188 = sphi 0, %s187
      %s202 = sphi 0, %s188
      %s206 = sphi 0, %s206
      %s208 = sphi 0, %s206
      %s209 = sphi 0, %s208
      %s223 = sphi 0, %s209
      %s227 = sphi 0, %s227
      %s229 = sphi 0, %s227
      %s230 = sphi 0, %s229
      %s244 = sphi 0, %s230
      %s248 = sphi 0, %s248
      %s250 = sphi 0, %s248
      %s251 = sphi 0, %s250
      %s265 = sphi 0, %s251
    $region4: #{simple_rnn_forward.1} parent=1 // loop_header_branch
      %21 = sbr.rel (%p19) target = $region8
    $region5: #{simple_rnn_forward.1} parent=1 // loop_body
      %s23 = ssub.s32 %s18, 1
      %s24 = ssub.s32 %s18, 2
      %s25 = sadd.s32 %s18, 1
      %s26 = ssub.s32 %s18, %s25
      %p27 = scmp.eq.s32.totalorder %s26, 0
      %s29 = sadd.s32 %s28, 1
      %s30 = scalar_select %p27, %s28, %s29
      %p33 = pneg %p27
      %p34 = scmp.eq.s32.totalorder %s18, 7
      %p35 = por %p33, %p34
      %p36 = scmp.ne.s32.totalorder %s28, %s31
      %p37 = scmp.eq.s32.totalorder %s18, 0
      %p38 = por %p36, %p37
      %p39 = scmp.ne.s32.totalorder %s28, %s31
      %p40 = scmp.eq.s32.totalorder %s23, 7
      %p41 = por %p39, %p40
      %p42 = scmp.ne.s32.totalorder %s31, %s32
      %p43 = scmp.eq.s32.totalorder %s23, 0
      %p44 = por %p42, %p43
      %p45 = scmp.ne.s32.totalorder %s31, %s32
      %p46 = scmp.eq.s32.totalorder %s24, 7
      %p47 = por %p45, %p46
      %p49 = scmp.ne.s32.totalorder %s32, %s48
      %p50 = scmp.eq.s32.totalorder %s24, 0
      %p51 = por %p49, %p50
      %s52 = ssub.s32 7, %s18
      %s53 = ssub.s32 7, %s25
      %s54 = ssub.s32 %s52, %s53
      %p55 = scmp.eq.s32.totalorder %s54, 0
      %s57 = sadd.s32 %s56, 1
      %s58 = scalar_select %p55, %s56, %s57
      %p61 = pneg %p55
      %p62 = scmp.eq.s32.totalorder %s18, 7
      %p63 = por %p61, %p62
      %p64 = scmp.ne.s32.totalorder %s56, %s59
      %p65 = scmp.eq.s32.totalorder %s18, 0
      %p66 = por %p64, %p65
      %p67 = scmp.ne.s32.totalorder %s56, %s59
      %p68 = scmp.eq.s32.totalorder %s23, 7
      %p69 = por %p67, %p68
      %p70 = scmp.ne.s32.totalorder %s59, %s60
      %p71 = scmp.eq.s32.totalorder %s23, 0
      %p72 = por %p70, %p71
      %p73 = scmp.ne.s32.totalorder %s59, %s60
      %p74 = scmp.eq.s32.totalorder %s24, 7
      %p75 = por %p73, %p74
      %p77 = scmp.ne.s32.totalorder %s60, %s76
      %p78 = scmp.eq.s32.totalorder %s24, 0
      %p79 = por %p77, %p78
      %s81 = sadd.s32 %s80, 1
      %p84 = scmp.eq.s32.totalorder %s18, 7
      %p85 = scmp.ne.s32.totalorder %s80, %s82
      %p86 = scmp.eq.s32.totalorder %s18, 0
      %p87 = por %p85, %p86
      %p88 = scmp.ne.s32.totalorder %s80, %s82
      %p89 = scmp.eq.s32.totalorder %s23, 7
      %p90 = por %p88, %p89
      %p91 = scmp.ne.s32.totalorder %s82, %s83
      %p92 = scmp.eq.s32.totalorder %s23, 0
      %p93 = por %p91, %p92
      %p94 = scmp.ne.s32.totalorder %s82, %s83
      %p95 = scmp.eq.s32.totalorder %s24, 7
      %p96 = por %p94, %p95
      %p98 = scmp.ne.s32.totalorder %s83, %s97
      %p99 = scmp.eq.s32.totalorder %s24, 0
      %p100 = por %p98, %p99
      %s102 = sadd.s32 %s101, 1
      %p105 = scmp.eq.s32.totalorder %s18, 7
      %p106 = scmp.ne.s32.totalorder %s101, %s103
      %p107 = scmp.eq.s32.totalorder %s18, 0
      %p108 = por %p106, %p107
      %p109 = scmp.ne.s32.totalorder %s101, %s103
      %p110 = scmp.eq.s32.totalorder %s23, 7
      %p111 = por %p109, %p110
      %p112 = scmp.ne.s32.totalorder %s103, %s104
      %p113 = scmp.eq.s32.totalorder %s23, 0
      %p114 = por %p112, %p113
      %p115 = scmp.ne.s32.totalorder %s103, %s104
      %p116 = scmp.eq.s32.totalorder %s24, 7
      %p117 = por %p115, %p116
      %p119 = scmp.ne.s32.totalorder %s104, %s118
      %p120 = scmp.eq.s32.totalorder %s24, 0
      %p121 = por %p119, %p120
      %s123 = sadd.s32 %s122, 1
      %p126 = scmp.eq.s32.totalorder %s18, 7
      %p127 = scmp.ne.s32.totalorder %s122, %s124
      %p128 = scmp.eq.s32.totalorder %s18, 0
      %p129 = por %p127, %p128
      %p130 = scmp.ne.s32.totalorder %s122, %s124
      %p131 = scmp.eq.s32.totalorder %s23, 7
      %p132 = por %p130, %p131
      %p133 = scmp.ne.s32.totalorder %s124, %s125
      %p134 = scmp.eq.s32.totalorder %s23, 0
      %p135 = por %p133, %p134
      %p136 = scmp.ne.s32.totalorder %s124, %s125
      %p137 = scmp.eq.s32.totalorder %s24, 7
      %p138 = por %p136, %p137
      %p140 = scmp.ne.s32.totalorder %s125, %s139
      %p141 = scmp.eq.s32.totalorder %s24, 0
      %p142 = por %p140, %p141
      %s144 = sadd.s32 %s143, 1
      %p147 = scmp.eq.s32.totalorder %s18, 7
      %p148 = scmp.ne.s32.totalorder %s143, %s145
      %p149 = scmp.eq.s32.totalorder %s18, 0
      %p150 = por %p148, %p149
      %p151 = scmp.ne.s32.totalorder %s143, %s145
      %p152 = scmp.eq.s32.totalorder %s23, 7
      %p153 = por %p151, %p152
      %p154 = scmp.ne.s32.totalorder %s145, %s146
      %p155 = scmp.eq.s32.totalorder %s23, 0
      %p156 = por %p154, %p155
      %p157 = scmp.ne.s32.totalorder %s145, %s146
      %p158 = scmp.eq.s32.totalorder %s24, 7
      %p159 = por %p157, %p158
      %p161 = scmp.ne.s32.totalorder %s146, %s160
      %p162 = scmp.eq.s32.totalorder %s24, 0
      %p163 = por %p161, %p162
      %s165 = sadd.s32 %s164, 1
      %p168 = scmp.eq.s32.totalorder %s18, 7
      %p169 = scmp.ne.s32.totalorder %s164, %s166
      %p170 = scmp.eq.s32.totalorder %s18, 0
      %p171 = por %p169, %p170
      %p172 = scmp.ne.s32.totalorder %s164, %s166
      %p173 = scmp.eq.s32.totalorder %s23, 7
      %p174 = por %p172, %p173
      %p175 = scmp.ne.s32.totalorder %s166, %s167
      %p176 = scmp.eq.s32.totalorder %s23, 0
      %p177 = por %p175, %p176
      %p178 = scmp.ne.s32.totalorder %s166, %s167
      %p179 = scmp.eq.s32.totalorder %s24, 7
      %p180 = por %p178, %p179
      %p182 = scmp.ne.s32.totalorder %s167, %s181
      %p183 = scmp.eq.s32.totalorder %s24, 0
      %p184 = por %p182, %p183
      %s186 = sadd.s32 %s185, 1
      %p189 = scmp.eq.s32.totalorder %s18, 7
      %p190 = scmp.ne.s32.totalorder %s185, %s187
      %p191 = scmp.eq.s32.totalorder %s18, 0
      %p192 = por %p190, %p191
      %p193 = scmp.ne.s32.totalorder %s185, %s187
      %p194 = scmp.eq.s32.totalorder %s23, 7
      %p195 = por %p193, %p194
      %p196 = scmp.ne.s32.totalorder %s187, %s188
      %p197 = scmp.eq.s32.totalorder %s23, 0
      %p198 = por %p196, %p197
      %p199 = scmp.ne.s32.totalorder %s187, %s188
      %p200 = scmp.eq.s32.totalorder %s24, 7
      %p201 = por %p199, %p200
      %p203 = scmp.ne.s32.totalorder %s188, %s202
      %p204 = scmp.eq.s32.totalorder %s24, 0
      %p205 = por %p203, %p204
      %s207 = sadd.s32 %s206, 1
      %p210 = scmp.eq.s32.totalorder %s18, 7
      %p211 = scmp.ne.s32.totalorder %s206, %s208
      %p212 = scmp.eq.s32.totalorder %s18, 0
      %p213 = por %p211, %p212
      %p214 = scmp.ne.s32.totalorder %s206, %s208
      %p215 = scmp.eq.s32.totalorder %s23, 7
      %p216 = por %p214, %p215
      %p217 = scmp.ne.s32.totalorder %s208, %s209
      %p218 = scmp.eq.s32.totalorder %s23, 0
      %p219 = por %p217, %p218
      %p220 = scmp.ne.s32.totalorder %s208, %s209
      %p221 = scmp.eq.s32.totalorder %s24, 7
      %p222 = por %p220, %p221
      %p224 = scmp.ne.s32.totalorder %s209, %s223
      %p225 = scmp.eq.s32.totalorder %s24, 0
      %p226 = por %p224, %p225
      %s228 = sadd.s32 %s227, 1
      %p231 = scmp.eq.s32.totalorder %s18, 7
      %p232 = scmp.ne.s32.totalorder %s227, %s229
      %p233 = scmp.eq.s32.totalorder %s18, 0
      %p234 = por %p232, %p233
      %p235 = scmp.ne.s32.totalorder %s227, %s229
      %p236 = scmp.eq.s32.totalorder %s23, 7
      %p237 = por %p235, %p236
      %p238 = scmp.ne.s32.totalorder %s229, %s230
      %p239 = scmp.eq.s32.totalorder %s23, 0
      %p240 = por %p238, %p239
      %p241 = scmp.ne.s32.totalorder %s229, %s230
      %p242 = scmp.eq.s32.totalorder %s24, 7
      %p243 = por %p241, %p242
      %p245 = scmp.ne.s32.totalorder %s230, %s244
      %p246 = scmp.eq.s32.totalorder %s24, 0
      %p247 = por %p245, %p246
      %s249 = sadd.s32 %s248, 1
      %p252 = scmp.eq.s32.totalorder %s18, 7
      %p253 = scmp.ne.s32.totalorder %s248, %s250
      %p254 = scmp.eq.s32.totalorder %s18, 0
      %p255 = por %p253, %p254
      %p256 = scmp.ne.s32.totalorder %s248, %s250
      %p257 = scmp.eq.s32.totalorder %s23, 7
      %p258 = por %p256, %p257
      %p259 = scmp.ne.s32.totalorder %s250, %s251
      %p260 = scmp.eq.s32.totalorder %s23, 0
      %p261 = por %p259, %p260
      %p262 = scmp.ne.s32.totalorder %s250, %s251
      %p263 = scmp.eq.s32.totalorder %s24, 7
      %p264 = por %p262, %p263
      %p266 = scmp.ne.s32.totalorder %s251, %s265
      %p267 = scmp.eq.s32.totalorder %s24, 0
      %p268 = por %p266, %p267
      %p269 = scmp.le.s32.totalorder 1, %s18
      %p270 = scmp.lt.s32.totalorder %s18, 9
      %p271 = pnand %p269, %p270
      %p272 = pneg %p271
      // Predicated region
      $region9: #{simple_rnn_forward.1} parent=5 // pred_check
        _
      $region10: #{simple_rnn_forward.1} parent=5 // pred_check_branch
        %274 = sbr.rel (%p271) target = $region12
      $region11: #{simple_rnn_forward.1} parent=5 // pred_region
        %s275 = ssub.s32 %s18, 1
        // Predicated region
        $region13: #{simple_rnn_forward.1} parent=11 // pred_check
          %p276 = pneg %p93
        $region14: #{simple_rnn_forward.1} parent=11 // pred_check_branch
          %278 = sbr.rel (%p276) target = $region16
        $region15: #{simple_rnn_forward.1} parent=11 // pred_region
          %s280 = ssub.s32 2560, 2560
          %281 = vsyncadd [#allocation5], %s280
          %s282 = sshll.u32 [#allocation4], 4
          %s283 = int_to_ptr.vmem [resolvable:$true] %s282
          %288 = dma.hbm_to_vmem [thread:$0]  %s2, 2560, %s283, [#allocation5], 256, 256, 16
        $region16: #{simple_rnn_forward.1} parent=11 // pred_fallthru
          _
        // Predicated region
        $region17: #{simple_rnn_forward.1} parent=11 // pred_check
          %p289 = pneg %p114
        $region18: #{simple_rnn_forward.1} parent=11 // pred_check_branch
          %291 = sbr.rel (%p289) target = $region20
        $region19: #{simple_rnn_forward.1} parent=11 // pred_region
          _
        $region20: #{simple_rnn_forward.1} parent=11 // pred_fallthru
          _
        // Predicated region
        $region21: #{simple_rnn_forward.1} parent=11 // pred_check
          %p292 = pneg %p135
        $region22: #{simple_rnn_forward.1} parent=11 // pred_check_branch
          %294 = sbr.rel (%p292) target = $region24
        $region23: #{simple_rnn_forward.1} parent=11 // pred_region
          _
        $region24: #{simple_rnn_forward.1} parent=11 // pred_fallthru
          _
        // Predicated region
        $region25: #{simple_rnn_forward.1} parent=11 // pred_check
          %p295 = pneg %p156
        $region26: #{simple_rnn_forward.1} parent=11 // pred_check_branch
          %297 = sbr.rel (%p295) target = $region28
        $region27: #{simple_rnn_forward.1} parent=11 // pred_region
          _
        $region28: #{simple_rnn_forward.1} parent=11 // pred_fallthru
          _
        // Predicated region
        $region29: #{simple_rnn_forward.1} parent=11 // pred_check
          %p298 = pneg %p177
        $region30: #{simple_rnn_forward.1} parent=11 // pred_check_branch
          %300 = sbr.rel (%p298) target = $region32
        $region31: #{simple_rnn_forward.1} parent=11 // pred_region
          %s302 = ssub.s32 2304, 2304
          %303 = vsyncadd [#allocation7], %s302
          %s304 = sshll.u32 [#allocation6], 4
          %s305 = int_to_ptr.vmem [resolvable:$true] %s304
          %310 = dma.hbm_to_vmem [thread:$0]  %s6, 2304, %s305, [#allocation7], 256, 256, 16
        $region32: #{simple_rnn_forward.1} parent=11 // pred_fallthru
          _
        // Predicated region
        $region33: #{simple_rnn_forward.1} parent=11 // pred_check
          %p311 = pneg %p198
        $region34: #{simple_rnn_forward.1} parent=11 // pred_check_branch
          %313 = sbr.rel (%p311) target = $region36
        $region35: #{simple_rnn_forward.1} parent=11 // pred_region
          _
        $region36: #{simple_rnn_forward.1} parent=11 // pred_fallthru
          _
        // Predicated region
        $region37: #{simple_rnn_forward.1} parent=11 // pred_check
          %p314 = pneg %p219
        $region38: #{simple_rnn_forward.1} parent=11 // pred_check_branch
          %316 = sbr.rel (%p314) target = $region40
        $region39: #{simple_rnn_forward.1} parent=11 // pred_region
          _
        $region40: #{simple_rnn_forward.1} parent=11 // pred_fallthru
          _
        // Predicated region
        $region41: #{simple_rnn_forward.1} parent=11 // pred_check
          %p317 = pneg %p240
        $region42: #{simple_rnn_forward.1} parent=11 // pred_check_branch
          %319 = sbr.rel (%p317) target = $region44
        $region43: #{simple_rnn_forward.1} parent=11 // pred_region
          _
        $region44: #{simple_rnn_forward.1} parent=11 // pred_fallthru
          _
      $region12: #{simple_rnn_forward.1} parent=5 // pred_fallthru
        _
      %p320 = scmp.lt.s32.totalorder %s18, 8
      // Predicated region
      $region45: #{simple_rnn_forward.1} parent=5 // pred_check
        %p321 = pneg %p320
      $region46: #{simple_rnn_forward.1} parent=5 // pred_check_branch
        %323 = sbr.rel (%p321) target = $region48
      $region47: #{simple_rnn_forward.1} parent=5 // pred_region
        // Predicated region
        $region49: #{simple_rnn_forward.1} parent=47 // pred_check
          %p324 = pneg %p38
        $region50: #{simple_rnn_forward.1} parent=47 // pred_check_branch
          %326 = sbr.rel (%p324) target = $region52
        $region51: #{simple_rnn_forward.1} parent=47 // pred_region
          %p327 = scmp.lt.s32.totalorder %s18, 7
          %s328 = scalar_select %p327, %s18, 7
          %s329 = smul.addr %s328, 2
          %s330 = scalar_lea.vmem %s0, %s329
        $region52: #{simple_rnn_forward.1} parent=47 // pred_fallthru
          _
        // Predicated region
        $region53: #{simple_rnn_forward.1} parent=47 // pred_check
          %p331 = pneg %p66
        $region54: #{simple_rnn_forward.1} parent=47 // pred_check_branch
          %333 = sbr.rel (%p331) target = $region56
        $region55: #{simple_rnn_forward.1} parent=47 // pred_region
          %s334 = ssub.s32 7, %s18
          %p335 = scmp.lt.s32.totalorder %s334, 7
          %s336 = scalar_select %p335, %s334, 7
          %s337 = smul.addr %s336, 2
          %s338 = scalar_lea.vmem %s1, %s337
          %s339 = ssub.s32 7, %s18
        $region56: #{simple_rnn_forward.1} parent=47 // pred_fallthru
          _
      $region48: #{simple_rnn_forward.1} parent=5 // pred_fallthru
        _
      %p340 = scmp.le.s32.totalorder 1, %s18
      %p341 = scmp.lt.s32.totalorder %s18, 9
      %p342 = pnand %p340, %p341
      %p343 = pneg %p342
      // Predicated region
      $region57: #{simple_rnn_forward.1} parent=5 // pred_check
        _
      $region58: #{simple_rnn_forward.1} parent=5 // pred_check_branch
        %345 = sbr.rel (%p342) target = $region60
      $region59: #{simple_rnn_forward.1} parent=5 // pred_region
        %s346 = ssub.s32 %s18, 1
        // Predicated region
        $region61: #{simple_rnn_forward.1} parent=59 // pred_check
          %p347 = pneg %p93
        $region62: #{simple_rnn_forward.1} parent=59 // pred_check_branch
          %349 = sbr.rel (%p347) target = $region64
        $region63: #{simple_rnn_forward.1} parent=59 // pred_region
          %350 = dma.done [#allocation5], 2560
        $region64: #{simple_rnn_forward.1} parent=59 // pred_fallthru
          _
        // Predicated region
        $region65: #{simple_rnn_forward.1} parent=59 // pred_check
          %p351 = pneg %p177
        $region66: #{simple_rnn_forward.1} parent=59 // pred_check_branch
          %353 = sbr.rel (%p351) target = $region68
        $region67: #{simple_rnn_forward.1} parent=59 // pred_region
          %354 = dma.done [#allocation7], 2304
        $region68: #{simple_rnn_forward.1} parent=59 // pred_fallthru
          _
        %p355 = scmp.lt.s32.totalorder %s23, 7
        %s356 = scalar_select %p355, %s23, 7
        %s357 = smul.addr %s356, 2
        %s358 = scalar_lea.vmem %s0, %s357
        %p359 = pneg %p44
        %p360 = pneg %p41
        %s361 = ssub.s32 7, %s23
        %p362 = scmp.lt.s32.totalorder %s361, 7
        %s363 = scalar_select %p362, %s361, 7
        %s364 = smul.addr %s363, 2
        %s365 = scalar_lea.vmem %s1, %s364
        %p366 = pneg %p72
        %p367 = pneg %p69
        %p368 = pneg %p93
        %p369 = pneg %p90
        %p370 = pneg %p114
        %p371 = pneg %p111
        %p372 = pneg %p135
        %p373 = pneg %p132
        %p374 = pneg %p156
        %p375 = pneg %p153
        %p376 = pneg %p177
        %p377 = pneg %p174
        %p378 = pneg %p198
        %p379 = pneg %p195
        %p380 = pneg %p219
        %p381 = pneg %p216
        %p382 = pneg %p240
        %p383 = pneg %p237
        %p384 = pneg %p261
        %p385 = pneg %p258
        %p386 = scmp.lt.s32.totalorder %s23, 7
        %s387 = scalar_select %p386, %s23, 7
        %s388 = smul.addr %s387, 2
        %s389 = scalar_lea.vmem %s0, %s388
        %s390 = ssub.s32 7, %s23
        %p391 = scmp.lt.s32.totalorder %s390, 7
        %s392 = scalar_select %p391, %s390, 7
        %s393 = smul.addr %s392, 2
        %s394 = scalar_lea.vmem %s1, %s393
        %s395 = ssub.s32 7, %s23
        %p396 = scmp.eq.s32.totalorder %s23, 0
        // Predicated region
        $region69: #{simple_rnn_forward.1} parent=59 // pred_check
          %p397 = pneg %p396
        $region70: #{simple_rnn_forward.1} parent=59 // pred_check_branch
          %399 = sbr.rel (%p397) target = $region72
        $region71: #{simple_rnn_forward.1} parent=59 // pred_region
          %vm400 = vcmask 517120
          %401 = vst.msk [vmem:[#allocation2] sm:$0x3] %vm400, 0.0
          %402 = vst.msk [vmem:[#allocation3] sm:$0x3] %vm400, 0.0
        $region72: #{simple_rnn_forward.1} parent=59 // pred_fallthru
          _
        %v403 = vld [vmem:[#allocation2] sm:$0x3]
        %v404 = vld [vmem:[#allocation3] sm:$0x3]
        %v405 = vld [vmem:[%s389] sm:$0x3]
        %v406 = vld [vmem:[%s394] sm:$0x3]
        %408 = vrot.lane.b32.xlu0 %v406, 8
        %v409 = vpop.permute.xlu0 %408
        %412 = vrot.lane.b32.xlu0 %v403, 16
        %v413 = vpop.permute.xlu0 %412
        %vm415 = vcmask 64512
        %v416 = vsel %vm415, %v405, %v409
        %vm417 = vcmask 130048
        %v418 = vsel %vm417, %v416, %v413
        %v419 = vld [vmem:[#allocation4] sm:$0xff]
        %v420 = vld [vmem:[#allocation4 + $0x8] sm:$0xff]
        %v421 = vld [vmem:[#allocation4 + $0x10] sm:$0xff]
        %v422 = vld [vmem:[#allocation4 + $0x18] sm:$0xff]
        %v423 = vld [vmem:[#allocation4 + $0x20] sm:$0xff]
        %v424 = vld [vmem:[#allocation4 + $0x28] sm:$0xff]
        %v425 = vld [vmem:[#allocation4 + $0x30] sm:$0xff]
        %v426 = vld [vmem:[#allocation4 + $0x38] sm:$0xff]
        %v427 = vld [vmem:[#allocation4 + $0x40] sm:$0xff]
        %v428 = vld [vmem:[#allocation4 + $0x48] sm:$0xff]
        %v429 = vld [vmem:[#allocation4 + $0x50] sm:$0xff]
        %v430 = vld [vmem:[#allocation4 + $0x58] sm:$0xff]
        %v431 = vld [vmem:[#allocation4 + $0x60] sm:$0xff]
        %v432 = vld [vmem:[#allocation4 + $0x68] sm:$0xff]
        %v433 = vld [vmem:[#allocation4 + $0x70] sm:$0xff]
        %v434 = vld [vmem:[#allocation4 + $0x78] sm:$0xff]
        %v435 = vld [vmem:[#allocation4 + $0x80] sm:$0xff]
        %v436 = vld [vmem:[#allocation4 + $0x88] sm:$0xff]
        %v437 = vld [vmem:[#allocation4 + $0x90] sm:$0xff]
        %v438 = vld [vmem:[#allocation4 + $0x98] sm:$0xff]
        %v439 = vld [vmem:[%s3] sm:$0x3]
        %v441 = vlaneseq
        %v442 = vshrl.u32 %v441, 7
        %v443 = vsub.s32 0, %v442
        %v444 = vrot.slane %v439, %v443
        %v445 = vlaneseq
        %v446 = vshrl.u32 %v445, 7
        %v447 = vsub.s32 1, %v446
        %v448 = vrot.slane %v439, %v447
        %vm451 = vcmask 654336
        %v453 = vsel %vm451, %v418, 0
        %455 = vmatprep.subr.mxu0 %v420
        %456 = vmatpush1.msra.mxu0 %v419
        %457 = vmatprep.subr.mxu0 %v422
        %458 = vmatpush1.msra.mxu0 %v421
        %459 = vmatprep.subr.mxu0 %v424
        %460 = vmatpush1.msra.mxu0 %v423
        %461 = vmatprep.subr.mxu0 %v426
        %462 = vmatpush1.msra.mxu0 %v425
        %463 = vmatprep.subr.mxu0 %v428
        %464 = vmatpush1.msra.mxu0 %v427
        %465 = vmatprep.subr.mxu0 %v430
        %466 = vmatpush1.msra.mxu0 %v429
        %467 = vmatprep.subr.mxu0 %v432
        %468 = vmatpush1.msra.mxu0 %v431
        %469 = vmatprep.subr.mxu0 %v434
        %470 = vmatpush1.msra.mxu0 %v433
        %471 = vmatprep.subr.mxu0 %v436
        %472 = vmatpush1.msra.mxu0 %v435
        %473 = vmatprep.subr.mxu0 %v438
        %474 = vmatpush1.msra.mxu0 %v437
        %475 = vmatprep.subr.mxu0 0.0
        %476 = vmatpush1.msra.mxu0 0.0
        %477 = vmatprep.subr.mxu0 0.0
        %478 = vmatpush1.msra.mxu0 0.0
        %479 = vmatprep.subr.mxu0 0.0
        %480 = vmatpush1.msra.mxu0 0.0
        %481 = vmatprep.subr.mxu0 0.0
        %482 = vmatpush1.msra.mxu0 0.0
        %483 = vmatprep.subr.mxu0 0.0
        %484 = vmatpush1.msra.mxu0 0.0
        %485 = vmatprep.subr.mxu0 0.0
        %486 = vmatpush1.msra.mxu0 0.0
        %487 = vmatprep.subr.mxu0 0.0
        %488 = vmatpush1.msra.mxu0 0.0
        %489 = vmatprep.subr.mxu0 0.0
        %490 = vmatpush1.msra.mxu0 0.0
        %491 = vmatprep.subr.mxu0 0.0
        %492 = vmatpush1.msra.mxu0 0.0
        %493 = vmatprep.subr.mxu0 0.0
        %494 = vmatpush1.msra.mxu0 0.0
        %495 = vmatprep.subr.mxu0 0.0
        %496 = vmatpush1.msra.mxu0 0.0
        %497 = vmatprep.subr.mxu0 0.0
        %498 = vmatpush1.msra.mxu0 0.0
        %499 = vmatprep.subr.mxu0 0.0
        %500 = vmatpush1.msra.mxu0 0.0
        %501 = vmatprep.subr.mxu0 0.0
        %502 = vmatpush1.msra.mxu0 0.0
        %503 = vmatprep.subr.mxu0 0.0
        %504 = vmatpush1.msra.mxu0 0.0
        %505 = vmatprep.subr.mxu0 0.0
        %506 = vmatpush1.msra.mxu0 0.0
        %507 = vmatprep.subr.mxu0 0.0
        %508 = vmatpush1.msra.mxu0 0.0
        %509 = vmatprep.subr.mxu0 0.0
        %510 = vmatpush1.msra.mxu0 0.0
        %511 = vmatprep.subr.mxu0 0.0
        %512 = vmatpush1.msra.mxu0 0.0
        %513 = vmatprep.subr.mxu0 0.0
        %514 = vmatpush1.msra.mxu0 0.0
        %515 = vmatprep.subr.mxu0 0.0
        %516 = vmatpush1.msra.mxu0 0.0
        %517 = vmatprep.subr.mxu0 0.0
        %518 = vmatpush1.msra.mxu0 0.0
        %519 = vmatprep.mubr.f32.mxu0 0.0
        %520 = vmatmul.mubr.f32.gmra.mrb[0].mxu0 %v453
        %v521 = vpop.f32.mrb[0].mxu0
        %v522 = vadd.f32 %v444, %v521
        %v523 = vpop.f32.mrb[0].mxu0
        %v524 = vadd.f32 %v448, %v523
        %525 = vdwg.mxu0
        %v526 = vxor.u32 %v522, 2147483648
        %v527 = vmul.f32 %v526, 1.442695
        %v528 = vpow.pop %v527
        %v529 = vadd.f32 %v528, 1.0
        %v530 = vrcp.pop %v529
        %v531 = vmul.f32 1.0, %v530
        %v532 = vtanh.pop %v524
        %v533 = vxor.u32 %v524, 2147483648
        %v534 = vmul.f32 %v533, 1.442695
        %v535 = vpow.pop %v534
        %v536 = vadd.f32 %v535, 1.0
        %v537 = vrcp.pop %v536
        %v538 = vmul.f32 1.0, %v537
        %540 = vrot.lane.b32.xlu0 %v404, 64
        %v541 = vpop.permute.xlu0 %540
        %v543 = vmul.f32 %v531, %v541
        %v544 = vmul.f32 %v531, %v532
        %546 = vrot.lane.b32.xlu0 %v544, 64
        %v547 = vpop.permute.xlu0 %546
        %v549 = vadd.f32 %v543, %v547
        %v550 = vtanh.pop %v549
        %v551 = vmul.f32 %v538, %v550
        %553 = vrot.lane.b32.xlu0 %v551, 64
        %v554 = vpop.permute.xlu0 %553
        %vm556 = vcmask 517120
        %557 = vst.msk [vmem:[#allocation2] sm:$0x3] %vm556, %v554
        %559 = vrot.lane.b32.xlu0 %v549, 64
        %v560 = vpop.permute.xlu0 %559
        %562 = vst.msk [vmem:[#allocation3] sm:$0x3] %vm556, %v560
        %p563 = scmp.eq.s32.totalorder %s23, 7
        // Predicated region
        $region73: #{simple_rnn_forward.1} parent=59 // pred_check
          %p564 = pneg %p563
        $region74: #{simple_rnn_forward.1} parent=59 // pred_check_branch
          %566 = sbr.rel (%p564) target = $region76
        $region75: #{simple_rnn_forward.1} parent=59 // pred_region
          %v567 = vld [vmem:[#allocation6] sm:$0xff]
          %v568 = vld [vmem:[#allocation6 + $0x8] sm:$0xff]
          %v569 = vld [vmem:[#allocation6 + $0x10] sm:$0xff]
          %v570 = vld [vmem:[#allocation6 + $0x18] sm:$0xff]
          %v571 = vld [vmem:[#allocation6 + $0x20] sm:$0xff]
          %v572 = vld [vmem:[#allocation6 + $0x28] sm:$0xff]
          %v573 = vld [vmem:[#allocation6 + $0x30] sm:$0xff]
          %v574 = vld [vmem:[#allocation6 + $0x38] sm:$0xff]
          %v575 = vld [vmem:[#allocation6 + $0x40] sm:$0xff]
          %v576 = vld [vmem:[#allocation6 + $0x48] sm:$0xff]
          %v577 = vld [vmem:[#allocation6 + $0x50] sm:$0xff]
          %v578 = vld [vmem:[#allocation6 + $0x58] sm:$0xff]
          %v579 = vld [vmem:[#allocation6 + $0x60] sm:$0xff]
          %v580 = vld [vmem:[#allocation6 + $0x68] sm:$0xff]
          %v581 = vld [vmem:[#allocation6 + $0x70] sm:$0xff]
          %v582 = vld [vmem:[#allocation6 + $0x78] sm:$0xff]
          %v583 = vld [vmem:[#allocation6 + $0x80] sm:$0xff]
          %v584 = vld [vmem:[#allocation6 + $0x88] sm:$0xff]
          %v585 = vld [vmem:[%s7] sm:$0x3]
          %v586 = vld [vmem:[%s8] sm:$0xff]
          %v587 = vld [vmem:[%s8 + $0x8] sm:$0xff]
          %v588 = vld [vmem:[%s8 + $0x10] sm:$0xff]
          %v589 = vld [vmem:[%s8 + $0x18] sm:$0xff]
          %v590 = vld [vmem:[%s8 + $0x20] sm:$0xff]
          %v591 = vld [vmem:[%s8 + $0x28] sm:$0xff]
          %v592 = vld [vmem:[%s8 + $0x30] sm:$0xff]
          %v593 = vld [vmem:[%s8 + $0x38] sm:$0xff]
          %v594 = vld [vmem:[%s9] sm:$0x1]
          %v595 = vld [vmem:[%s4] sm:$0x3]
          %596 = vrot.lane.b32.xlu0 %v551, 72
          %v597 = vpop.permute.xlu0 %596
          %v599 = vsel %vm415, %v595, %v597
          %v601 = vlaneseq
          %v602 = vshrl.u32 %v601, 7
          %v603 = vsub.s32 0, %v602
          %v604 = vrot.slane %v585, %v603
          %v605 = vlaneseq
          %v606 = vshrl.u32 %v605, 7
          %v607 = vsub.s32 1, %v606
          %v608 = vrot.slane %v585, %v607
          %vm611 = vcmask 588800
          %v613 = vsel %vm611, %v599, 0
          %615 = vmatprep.subr.mxu0 %v568
          %616 = vmatpush1.msra.mxu0 %v567
          %617 = vmatprep.subr.mxu0 %v570
          %618 = vmatpush1.msra.mxu0 %v569
          %619 = vmatprep.subr.mxu0 %v572
          %620 = vmatpush1.msra.mxu0 %v571
          %621 = vmatprep.subr.mxu0 %v574
          %622 = vmatpush1.msra.mxu0 %v573
          %623 = vmatprep.subr.mxu0 %v576
          %624 = vmatpush1.msra.mxu0 %v575
          %625 = vmatprep.subr.mxu0 %v578
          %626 = vmatpush1.msra.mxu0 %v577
          %627 = vmatprep.subr.mxu0 %v580
          %628 = vmatpush1.msra.mxu0 %v579
          %629 = vmatprep.subr.mxu0 %v582
          %630 = vmatpush1.msra.mxu0 %v581
          %631 = vmatprep.subr.mxu0 %v584
          %632 = vmatpush1.msra.mxu0 %v583
          %633 = vmatprep.subr.mxu0 0.0
          %634 = vmatpush1.msra.mxu0 0.0
          %635 = vmatprep.subr.mxu0 0.0
          %636 = vmatpush1.msra.mxu0 0.0
          %637 = vmatprep.subr.mxu0 0.0
          %638 = vmatpush1.msra.mxu0 0.0
          %639 = vmatprep.subr.mxu0 0.0
          %640 = vmatpush1.msra.mxu0 0.0
          %641 = vmatprep.subr.mxu0 0.0
          %642 = vmatpush1.msra.mxu0 0.0
          %643 = vmatprep.subr.mxu0 0.0
          %644 = vmatpush1.msra.mxu0 0.0
          %645 = vmatprep.subr.mxu0 0.0
          %646 = vmatpush1.msra.mxu0 0.0
          %647 = vmatprep.subr.mxu0 0.0
          %648 = vmatpush1.msra.mxu0 0.0
          %649 = vmatprep.subr.mxu0 0.0
          %650 = vmatpush1.msra.mxu0 0.0
          %651 = vmatprep.subr.mxu0 0.0
          %652 = vmatpush1.msra.mxu0 0.0
          %653 = vmatprep.subr.mxu0 0.0
          %654 = vmatpush1.msra.mxu0 0.0
          %655 = vmatprep.subr.mxu0 0.0
          %656 = vmatpush1.msra.mxu0 0.0
          %657 = vmatprep.subr.mxu0 0.0
          %658 = vmatpush1.msra.mxu0 0.0
          %659 = vmatprep.subr.mxu0 0.0
          %660 = vmatpush1.msra.mxu0 0.0
          %661 = vmatprep.subr.mxu0 0.0
          %662 = vmatpush1.msra.mxu0 0.0
          %663 = vmatprep.subr.mxu0 0.0
          %664 = vmatpush1.msra.mxu0 0.0
          %665 = vmatprep.subr.mxu0 0.0
          %666 = vmatpush1.msra.mxu0 0.0
          %667 = vmatprep.subr.mxu0 0.0
          %668 = vmatpush1.msra.mxu0 0.0
          %669 = vmatprep.subr.mxu0 0.0
          %670 = vmatpush1.msra.mxu0 0.0
          %671 = vmatprep.subr.mxu0 0.0
          %672 = vmatpush1.msra.mxu0 0.0
          %673 = vmatprep.subr.mxu0 0.0
          %674 = vmatpush1.msra.mxu0 0.0
          %675 = vmatprep.subr.mxu0 0.0
          %676 = vmatpush1.msra.mxu0 0.0
          %677 = vmatprep.subr.mxu0 0.0
          %678 = vmatpush1.msra.mxu0 0.0
          %679 = vmatprep.mubr.f32.mxu0 0.0
          %680 = vmatmul.mubr.f32.gmra.mrb[0].mxu0 %v613
          %v681 = vpop.f32.mrb[0].mxu0
          %v682 = vadd.f32 %v604, %v681
          %v683 = vpop.f32.mrb[0].mxu0
          %v684 = vadd.f32 %v608, %v683
          %685 = vdwg.mxu0
          %v686 = vxor.u32 %v682, 2147483648
          %v687 = vmul.f32 %v686, 1.442695
          %v688 = vpow.pop %v687
          %v689 = vadd.f32 %v688, 1.0
          %v690 = vrcp.pop %v689
          %v691 = vmul.f32 1.0, %v690
          %v692 = vtanh.pop %v684
          %v693 = vxor.u32 %v684, 2147483648
          %v694 = vmul.f32 %v693, 1.442695
          %v695 = vpow.pop %v694
          %v696 = vadd.f32 %v695, 1.0
          %v697 = vrcp.pop %v696
          %v698 = vmul.f32 1.0, %v697
          %v699 = vmul.f32 %v691, %v549
          %v700 = vmul.f32 %v691, %v692
          %702 = vrot.lane.b32.xlu0 %v700, 64
          %v703 = vpop.permute.xlu0 %702
          %v705 = vadd.f32 %v699, %v703
          %v706 = vtanh.pop %v705
          %v707 = vmul.f32 %v698, %v706
          %v709 = vlaneseq
          %v710 = vshrl.u32 %v709, 7
          %v711 = vsub.s32 0, %v710
          %v712 = vrot.slane %v594, %v711
          %715 = vrot.lane.b32.xlu0 %v707, 64
          %v716 = vpop.permute.xlu0 %715
          %vm717 = vcmask 523264
          %v718 = vsel %vm717, %v716, 0
          %720 = vmatprep.subr.mxu0 0.0
          %721 = vmatpush1.msra.mxu0 %v586
          %722 = vmatprep.subr.mxu0 0.0
          %723 = vmatpush1.msra.mxu0 %v587
          %724 = vmatprep.subr.mxu0 0.0
          %725 = vmatpush1.msra.mxu0 %v588
          %726 = vmatprep.subr.mxu0 0.0
          %727 = vmatpush1.msra.mxu0 %v589
          %728 = vmatprep.subr.mxu0 0.0
          %729 = vmatpush1.msra.mxu0 %v590
          %730 = vmatprep.subr.mxu0 0.0
          %731 = vmatpush1.msra.mxu0 %v591
          %732 = vmatprep.subr.mxu0 0.0
          %733 = vmatpush1.msra.mxu0 %v592
          %734 = vmatprep.subr.mxu0 0.0
          %735 = vmatpush1.msra.mxu0 %v593
          %736 = vmatprep.subr.mxu0 0.0
          %737 = vmatpush1.msra.mxu0 0.0
          %738 = vmatprep.subr.mxu0 0.0
          %739 = vmatpush1.msra.mxu0 0.0
          %740 = vmatprep.subr.mxu0 0.0
          %741 = vmatpush1.msra.mxu0 0.0
          %742 = vmatprep.subr.mxu0 0.0
          %743 = vmatpush1.msra.mxu0 0.0
          %744 = vmatprep.subr.mxu0 0.0
          %745 = vmatpush1.msra.mxu0 0.0
          %746 = vmatprep.subr.mxu0 0.0
          %747 = vmatpush1.msra.mxu0 0.0
          %748 = vmatprep.subr.mxu0 0.0
          %749 = vmatpush1.msra.mxu0 0.0
          %750 = vmatprep.subr.mxu0 0.0
          %751 = vmatpush1.msra.mxu0 0.0
          %752 = vmatprep.subr.mxu0 0.0
          %753 = vmatpush1.msra.mxu0 0.0
          %754 = vmatprep.subr.mxu0 0.0
          %755 = vmatpush1.msra.mxu0 0.0
          %756 = vmatprep.subr.mxu0 0.0
          %757 = vmatpush1.msra.mxu0 0.0
          %758 = vmatprep.subr.mxu0 0.0
          %759 = vmatpush1.msra.mxu0 0.0
          %760 = vmatprep.subr.mxu0 0.0
          %761 = vmatpush1.msra.mxu0 0.0
          %762 = vmatprep.subr.mxu0 0.0
          %763 = vmatpush1.msra.mxu0 0.0
          %764 = vmatprep.subr.mxu0 0.0
          %765 = vmatpush1.msra.mxu0 0.0
          %766 = vmatprep.subr.mxu0 0.0
          %767 = vmatpush1.msra.mxu0 0.0
          %768 = vmatprep.subr.mxu0 0.0
          %769 = vmatpush1.msra.mxu0 0.0
          %770 = vmatprep.subr.mxu0 0.0
          %771 = vmatpush1.msra.mxu0 0.0
          %772 = vmatprep.subr.mxu0 0.0
          %773 = vmatpush1.msra.mxu0 0.0
          %774 = vmatprep.subr.mxu0 0.0
          %775 = vmatpush1.msra.mxu0 0.0
          %776 = vmatprep.subr.mxu0 0.0
          %777 = vmatpush1.msra.mxu0 0.0
          %778 = vmatprep.subr.mxu0 0.0
          %779 = vmatpush1.msra.mxu0 0.0
          %780 = vmatprep.subr.mxu0 0.0
          %781 = vmatpush1.msra.mxu0 0.0
          %782 = vmatprep.subr.mxu0 0.0
          %783 = vmatpush1.msra.mxu0 0.0
          %784 = vmatprep.mubr.f32.mxu0 0.0
          %785 = vmatmul.mubr.f32.gmra.mrb[0].mxu0 %v718
          %v786 = vpop.f32.mrb[0].mxu0
          %v787 = vadd.f32 %v712, %v786
          %v788 = vpop.f32.mrb[0].mxu0
          %789 = vdwg.mxu0
          %vm790 = vcmask 58368
          %791 = vst.msk [vmem:[%s10] sm:$0x3] %vm790, %v787
          %792 = vrot.lane.b32.xlu0 %v707, 72
          %v793 = vpop.permute.xlu0 %792
          %v795 = vsel %vm415, %v787, %v793
          %v797 = vsel %vm611, %v795, 0
          %799 = vmatprep.subr.mxu0 %v568
          %800 = vmatpush1.msra.mxu0 %v567
          %801 = vmatprep.subr.mxu0 %v570
          %802 = vmatpush1.msra.mxu0 %v569
          %803 = vmatprep.subr.mxu0 %v572
          %804 = vmatpush1.msra.mxu0 %v571
          %805 = vmatprep.subr.mxu0 %v574
          %806 = vmatpush1.msra.mxu0 %v573
          %807 = vmatprep.subr.mxu0 %v576
          %808 = vmatpush1.msra.mxu0 %v575
          %809 = vmatprep.subr.mxu0 %v578
          %810 = vmatpush1.msra.mxu0 %v577
          %811 = vmatprep.subr.mxu0 %v580
          %812 = vmatpush1.msra.mxu0 %v579
          %813 = vmatprep.subr.mxu0 %v582
          %814 = vmatpush1.msra.mxu0 %v581
          %815 = vmatprep.subr.mxu0 %v584
          %816 = vmatpush1.msra.mxu0 %v583
          %817 = vmatprep.subr.mxu0 0.0
          %818 = vmatpush1.msra.mxu0 0.0
          %819 = vmatprep.subr.mxu0 0.0
          %820 = vmatpush1.msra.mxu0 0.0
          %821 = vmatprep.subr.mxu0 0.0
          %822 = vmatpush1.msra.mxu0 0.0
          %823 = vmatprep.subr.mxu0 0.0
          %824 = vmatpush1.msra.mxu0 0.0
          %825 = vmatprep.subr.mxu0 0.0
          %826 = vmatpush1.msra.mxu0 0.0
          %827 = vmatprep.subr.mxu0 0.0
          %828 = vmatpush1.msra.mxu0 0.0
          %829 = vmatprep.subr.mxu0 0.0
          %830 = vmatpush1.msra.mxu0 0.0
          %831 = vmatprep.subr.mxu0 0.0
          %832 = vmatpush1.msra.mxu0 0.0
          %833 = vmatprep.subr.mxu0 0.0
          %834 = vmatpush1.msra.mxu0 0.0
          %835 = vmatprep.subr.mxu0 0.0
          %836 = vmatpush1.msra.mxu0 0.0
          %837 = vmatprep.subr.mxu0 0.0
          %838 = vmatpush1.msra.mxu0 0.0
          %839 = vmatprep.subr.mxu0 0.0
          %840 = vmatpush1.msra.mxu0 0.0
          %841 = vmatprep.subr.mxu0 0.0
          %842 = vmatpush1.msra.mxu0 0.0
          %843 = vmatprep.subr.mxu0 0.0
          %844 = vmatpush1.msra.mxu0 0.0
          %845 = vmatprep.subr.mxu0 0.0
          %846 = vmatpush1.msra.mxu0 0.0
          %847 = vmatprep.subr.mxu0 0.0
          %848 = vmatpush1.msra.mxu0 0.0
          %849 = vmatprep.subr.mxu0 0.0
          %850 = vmatpush1.msra.mxu0 0.0
          %851 = vmatprep.subr.mxu0 0.0
          %852 = vmatpush1.msra.mxu0 0.0
          %853 = vmatprep.subr.mxu0 0.0
          %854 = vmatpush1.msra.mxu0 0.0
          %855 = vmatprep.subr.mxu0 0.0
          %856 = vmatpush1.msra.mxu0 0.0
          %857 = vmatprep.subr.mxu0 0.0
          %858 = vmatpush1.msra.mxu0 0.0
          %859 = vmatprep.subr.mxu0 0.0
          %860 = vmatpush1.msra.mxu0 0.0
          %861 = vmatprep.subr.mxu0 0.0
          %862 = vmatpush1.msra.mxu0 0.0
          %863 = vmatprep.mubr.f32.mxu0 0.0
          %864 = vmatmul.mubr.f32.gmra.mrb[0].mxu0 %v797
          %v865 = vpop.f32.mrb[0].mxu0
          %v866 = vadd.f32 %v604, %v865
          %v867 = vpop.f32.mrb[0].mxu0
          %v868 = vadd.f32 %v608, %v867
          %869 = vdwg.mxu0
          %v870 = vxor.u32 %v866, 2147483648
          %v871 = vmul.f32 %v870, 1.442695
          %v872 = vpow.pop %v871
          %v873 = vadd.f32 %v872, 1.0
          %v874 = vrcp.pop %v873
          %v875 = vmul.f32 1.0, %v874
          %v876 = vtanh.pop %v868
          %v877 = vxor.u32 %v868, 2147483648
          %v878 = vmul.f32 %v877, 1.442695
          %v879 = vpow.pop %v878
          %v880 = vadd.f32 %v879, 1.0
          %v881 = vrcp.pop %v880
          %v882 = vmul.f32 1.0, %v881
          %v883 = vmul.f32 %v875, %v705
          %v884 = vmul.f32 %v875, %v876
          %886 = vrot.lane.b32.xlu0 %v884, 64
          %v887 = vpop.permute.xlu0 %886
          %v889 = vadd.f32 %v883, %v887
          %v890 = vtanh.pop %v889
          %v891 = vmul.f32 %v882, %v890
          %893 = vrot.lane.b32.xlu0 %v891, 64
          %v894 = vpop.permute.xlu0 %893
          %v895 = vsel %vm717, %v894, 0
          %897 = vmatprep.subr.mxu0 0.0
          %898 = vmatpush1.msra.mxu0 %v586
          %899 = vmatprep.subr.mxu0 0.0
          %900 = vmatpush1.msra.mxu0 %v587
          %901 = vmatprep.subr.mxu0 0.0
          %902 = vmatpush1.msra.mxu0 %v588
          %903 = vmatprep.subr.mxu0 0.0
          %904 = vmatpush1.msra.mxu0 %v589
          %905 = vmatprep.subr.mxu0 0.0
          %906 = vmatpush1.msra.mxu0 %v590
          %907 = vmatprep.subr.mxu0 0.0
          %908 = vmatpush1.msra.mxu0 %v591
          %909 = vmatprep.subr.mxu0 0.0
          %910 = vmatpush1.msra.mxu0 %v592
          %911 = vmatprep.subr.mxu0 0.0
          %912 = vmatpush1.msra.mxu0 %v593
          %913 = vmatprep.subr.mxu0 0.0
          %914 = vmatpush1.msra.mxu0 0.0
          %915 = vmatprep.subr.mxu0 0.0
          %916 = vmatpush1.msra.mxu0 0.0
          %917 = vmatprep.subr.mxu0 0.0
          %918 = vmatpush1.msra.mxu0 0.0
          %919 = vmatprep.subr.mxu0 0.0
          %920 = vmatpush1.msra.mxu0 0.0
          %921 = vmatprep.subr.mxu0 0.0
          %922 = vmatpush1.msra.mxu0 0.0
          %923 = vmatprep.subr.mxu0 0.0
          %924 = vmatpush1.msra.mxu0 0.0
          %925 = vmatprep.subr.mxu0 0.0
          %926 = vmatpush1.msra.mxu0 0.0
          %927 = vmatprep.subr.mxu0 0.0
          %928 = vmatpush1.msra.mxu0 0.0
          %929 = vmatprep.subr.mxu0 0.0
          %930 = vmatpush1.msra.mxu0 0.0
          %931 = vmatprep.subr.mxu0 0.0
          %932 = vmatpush1.msra.mxu0 0.0
          %933 = vmatprep.subr.mxu0 0.0
          %934 = vmatpush1.msra.mxu0 0.0
          %935 = vmatprep.subr.mxu0 0.0
          %936 = vmatpush1.msra.mxu0 0.0
          %937 = vmatprep.subr.mxu0 0.0
          %938 = vmatpush1.msra.mxu0 0.0
          %939 = vmatprep.subr.mxu0 0.0
          %940 = vmatpush1.msra.mxu0 0.0
          %941 = vmatprep.subr.mxu0 0.0
          %942 = vmatpush1.msra.mxu0 0.0
          %943 = vmatprep.subr.mxu0 0.0
          %944 = vmatpush1.msra.mxu0 0.0
          %945 = vmatprep.subr.mxu0 0.0
          %946 = vmatpush1.msra.mxu0 0.0
          %947 = vmatprep.subr.mxu0 0.0
          %948 = vmatpush1.msra.mxu0 0.0
          %949 = vmatprep.subr.mxu0 0.0
          %950 = vmatpush1.msra.mxu0 0.0
          %951 = vmatprep.subr.mxu0 0.0
          %952 = vmatpush1.msra.mxu0 0.0
          %953 = vmatprep.subr.mxu0 0.0
          %954 = vmatpush1.msra.mxu0 0.0
          %955 = vmatprep.subr.mxu0 0.0
          %956 = vmatpush1.msra.mxu0 0.0
          %957 = vmatprep.subr.mxu0 0.0
          %958 = vmatpush1.msra.mxu0 0.0
          %959 = vmatprep.subr.mxu0 0.0
          %960 = vmatpush1.msra.mxu0 0.0
          %961 = vmatprep.mubr.f32.mxu0 0.0
          %962 = vmatmul.mubr.f32.gmra.mrb[0].mxu0 %v895
          %v963 = vpop.f32.mrb[0].mxu0
          %v964 = vadd.f32 %v712, %v963
          %v965 = vpop.f32.mrb[0].mxu0
          %966 = vdwg.mxu0
          %s967 = scalar_lea.vmem %s10, 2
          %968 = vst.msk [vmem:[%s967] sm:$0x3] %vm790, %v964
          %969 = vrot.lane.b32.xlu0 %v891, 72
          %v970 = vpop.permute.xlu0 %969
          %v972 = vsel %vm415, %v964, %v970
          %v974 = vsel %vm611, %v972, 0
          %976 = vmatprep.subr.mxu0 %v568
          %977 = vmatpush1.msra.mxu0 %v567
          %978 = vmatprep.subr.mxu0 %v570
          %979 = vmatpush1.msra.mxu0 %v569
          %980 = vmatprep.subr.mxu0 %v572
          %981 = vmatpush1.msra.mxu0 %v571
          %982 = vmatprep.subr.mxu0 %v574
          %983 = vmatpush1.msra.mxu0 %v573
          %984 = vmatprep.subr.mxu0 %v576
          %985 = vmatpush1.msra.mxu0 %v575
          %986 = vmatprep.subr.mxu0 %v578
          %987 = vmatpush1.msra.mxu0 %v577
          %988 = vmatprep.subr.mxu0 %v580
          %989 = vmatpush1.msra.mxu0 %v579
          %990 = vmatprep.subr.mxu0 %v582
          %991 = vmatpush1.msra.mxu0 %v581
          %992 = vmatprep.subr.mxu0 %v584
          %993 = vmatpush1.msra.mxu0 %v583
          %994 = vmatprep.subr.mxu0 0.0
          %995 = vmatpush1.msra.mxu0 0.0
          %996 = vmatprep.subr.mxu0 0.0
          %997 = vmatpush1.msra.mxu0 0.0
          %998 = vmatprep.subr.mxu0 0.0
          %999 = vmatpush1.msra.mxu0 0.0
          %1000 = vmatprep.subr.mxu0 0.0
          %1001 = vmatpush1.msra.mxu0 0.0
          %1002 = vmatprep.subr.mxu0 0.0
          %1003 = vmatpush1.msra.mxu0 0.0
          %1004 = vmatprep.subr.mxu0 0.0
          %1005 = vmatpush1.msra.mxu0 0.0
          %1006 = vmatprep.subr.mxu0 0.0
          %1007 = vmatpush1.msra.mxu0 0.0
          %1008 = vmatprep.subr.mxu0 0.0
          %1009 = vmatpush1.msra.mxu0 0.0
          %1010 = vmatprep.subr.mxu0 0.0
          %1011 = vmatpush1.msra.mxu0 0.0
          %1012 = vmatprep.subr.mxu0 0.0
          %1013 = vmatpush1.msra.mxu0 0.0
          %1014 = vmatprep.subr.mxu0 0.0
          %1015 = vmatpush1.msra.mxu0 0.0
          %1016 = vmatprep.subr.mxu0 0.0
          %1017 = vmatpush1.msra.mxu0 0.0
          %1018 = vmatprep.subr.mxu0 0.0
          %1019 = vmatpush1.msra.mxu0 0.0
          %1020 = vmatprep.subr.mxu0 0.0
          %1021 = vmatpush1.msra.mxu0 0.0
          %1022 = vmatprep.subr.mxu0 0.0
          %1023 = vmatpush1.msra.mxu0 0.0
          %1024 = vmatprep.subr.mxu0 0.0
          %1025 = vmatpush1.msra.mxu0 0.0
          %1026 = vmatprep.subr.mxu0 0.0
          %1027 = vmatpush1.msra.mxu0 0.0
          %1028 = vmatprep.subr.mxu0 0.0
          %1029 = vmatpush1.msra.mxu0 0.0
          %1030 = vmatprep.subr.mxu0 0.0
          %1031 = vmatpush1.msra.mxu0 0.0
          %1032 = vmatprep.subr.mxu0 0.0
          %1033 = vmatpush1.msra.mxu0 0.0
          %1034 = vmatprep.subr.mxu0 0.0
          %1035 = vmatpush1.msra.mxu0 0.0
          %1036 = vmatprep.subr.mxu0 0.0
          %1037 = vmatpush1.msra.mxu0 0.0
          %1038 = vmatprep.subr.mxu0 0.0
          %1039 = vmatpush1.msra.mxu0 0.0
          %1040 = vmatprep.mubr.f32.mxu0 0.0
          %1041 = vmatmul.mubr.f32.gmra.mrb[0].mxu0 %v974
          %v1042 = vpop.f32.mrb[0].mxu0
          %v1043 = vadd.f32 %v604, %v1042
          %v1044 = vpop.f32.mrb[0].mxu0
          %v1045 = vadd.f32 %v608, %v1044
          %1046 = vdwg.mxu0
          %v1047 = vxor.u32 %v1043, 2147483648
          %v1048 = vmul.f32 %v1047, 1.442695
          %v1049 = vpow.pop %v1048
          %v1050 = vadd.f32 %v1049, 1.0
          %v1051 = vrcp.pop %v1050
          %v1052 = vmul.f32 1.0, %v1051
          %v1053 = vtanh.pop %v1045
          %v1054 = vxor.u32 %v1045, 2147483648
          %v1055 = vmul.f32 %v1054, 1.442695
          %v1056 = vpow.pop %v1055
          %v1057 = vadd.f32 %v1056, 1.0
          %v1058 = vrcp.pop %v1057
          %v1059 = vmul.f32 1.0, %v1058
          %v1060 = vmul.f32 %v1052, %v889
          %v1061 = vmul.f32 %v1052, %v1053
          %1063 = vrot.lane.b32.xlu0 %v1061, 64
          %v1064 = vpop.permute.xlu0 %1063
          %v1066 = vadd.f32 %v1060, %v1064
          %v1067 = vtanh.pop %v1066
          %v1068 = vmul.f32 %v1059, %v1067
          %1070 = vrot.lane.b32.xlu0 %v1068, 64
          %v1071 = vpop.permute.xlu0 %1070
          %v1072 = vsel %vm717, %v1071, 0
          %1074 = vmatprep.subr.mxu0 0.0
          %1075 = vmatpush1.msra.mxu0 %v586
          %1076 = vmatprep.subr.mxu0 0.0
          %1077 = vmatpush1.msra.mxu0 %v587
          %1078 = vmatprep.subr.mxu0 0.0
          %1079 = vmatpush1.msra.mxu0 %v588
          %1080 = vmatprep.subr.mxu0 0.0
          %1081 = vmatpush1.msra.mxu0 %v589
          %1082 = vmatprep.subr.mxu0 0.0
          %1083 = vmatpush1.msra.mxu0 %v590
          %1084 = vmatprep.subr.mxu0 0.0
          %1085 = vmatpush1.msra.mxu0 %v591
          %1086 = vmatprep.subr.mxu0 0.0
          %1087 = vmatpush1.msra.mxu0 %v592
          %1088 = vmatprep.subr.mxu0 0.0
          %1089 = vmatpush1.msra.mxu0 %v593
          %1090 = vmatprep.subr.mxu0 0.0
          %1091 = vmatpush1.msra.mxu0 0.0
          %1092 = vmatprep.subr.mxu0 0.0
          %1093 = vmatpush1.msra.mxu0 0.0
          %1094 = vmatprep.subr.mxu0 0.0
          %1095 = vmatpush1.msra.mxu0 0.0
          %1096 = vmatprep.subr.mxu0 0.0
          %1097 = vmatpush1.msra.mxu0 0.0
          %1098 = vmatprep.subr.mxu0 0.0
          %1099 = vmatpush1.msra.mxu0 0.0
          %1100 = vmatprep.subr.mxu0 0.0
          %1101 = vmatpush1.msra.mxu0 0.0
          %1102 = vmatprep.subr.mxu0 0.0
          %1103 = vmatpush1.msra.mxu0 0.0
          %1104 = vmatprep.subr.mxu0 0.0
          %1105 = vmatpush1.msra.mxu0 0.0
          %1106 = vmatprep.subr.mxu0 0.0
          %1107 = vmatpush1.msra.mxu0 0.0
          %1108 = vmatprep.subr.mxu0 0.0
          %1109 = vmatpush1.msra.mxu0 0.0
          %1110 = vmatprep.subr.mxu0 0.0
          %1111 = vmatpush1.msra.mxu0 0.0
          %1112 = vmatprep.subr.mxu0 0.0
          %1113 = vmatpush1.msra.mxu0 0.0
          %1114 = vmatprep.subr.mxu0 0.0
          %1115 = vmatpush1.msra.mxu0 0.0
          %1116 = vmatprep.subr.mxu0 0.0
          %1117 = vmatpush1.msra.mxu0 0.0
          %1118 = vmatprep.subr.mxu0 0.0
          %1119 = vmatpush1.msra.mxu0 0.0
          %1120 = vmatprep.subr.mxu0 0.0
          %1121 = vmatpush1.msra.mxu0 0.0
          %1122 = vmatprep.subr.mxu0 0.0
          %1123 = vmatpush1.msra.mxu0 0.0
          %1124 = vmatprep.subr.mxu0 0.0
          %1125 = vmatpush1.msra.mxu0 0.0
          %1126 = vmatprep.subr.mxu0 0.0
          %1127 = vmatpush1.msra.mxu0 0.0
          %1128 = vmatprep.subr.mxu0 0.0
          %1129 = vmatpush1.msra.mxu0 0.0
          %1130 = vmatprep.subr.mxu0 0.0
          %1131 = vmatpush1.msra.mxu0 0.0
          %1132 = vmatprep.subr.mxu0 0.0
          %1133 = vmatpush1.msra.mxu0 0.0
          %1134 = vmatprep.subr.mxu0 0.0
          %1135 = vmatpush1.msra.mxu0 0.0
          %1136 = vmatprep.subr.mxu0 0.0
          %1137 = vmatpush1.msra.mxu0 0.0
          %1138 = vmatprep.mubr.f32.mxu0 0.0
          %1139 = vmatmul.mubr.f32.gmra.mrb[0].mxu0 %v1072
          %v1140 = vpop.f32.mrb[0].mxu0
          %v1141 = vadd.f32 %v712, %v1140
          %v1142 = vpop.f32.mrb[0].mxu0
          %1143 = vdwg.mxu0
          %s1144 = scalar_lea.vmem %s10, 4
          %1145 = vst.msk [vmem:[%s1144] sm:$0x3] %vm790, %v1141
          %1146 = vrot.lane.b32.xlu0 %v1068, 72
          %v1147 = vpop.permute.xlu0 %1146
          %v1149 = vsel %vm415, %v1141, %v1147
          %v1151 = vsel %vm611, %v1149, 0
          %1153 = vmatprep.subr.mxu0 %v568
          %1154 = vmatpush1.msra.mxu0 %v567
          %1155 = vmatprep.subr.mxu0 %v570
          %1156 = vmatpush1.msra.mxu0 %v569
          %1157 = vmatprep.subr.mxu0 %v572
          %1158 = vmatpush1.msra.mxu0 %v571
          %1159 = vmatprep.subr.mxu0 %v574
          %1160 = vmatpush1.msra.mxu0 %v573
          %1161 = vmatprep.subr.mxu0 %v576
          %1162 = vmatpush1.msra.mxu0 %v575
          %1163 = vmatprep.subr.mxu0 %v578
          %1164 = vmatpush1.msra.mxu0 %v577
          %1165 = vmatprep.subr.mxu0 %v580
          %1166 = vmatpush1.msra.mxu0 %v579
          %1167 = vmatprep.subr.mxu0 %v582
          %1168 = vmatpush1.msra.mxu0 %v581
          %1169 = vmatprep.subr.mxu0 %v584
          %1170 = vmatpush1.msra.mxu0 %v583
          %1171 = vmatprep.subr.mxu0 0.0
          %1172 = vmatpush1.msra.mxu0 0.0
          %1173 = vmatprep.subr.mxu0 0.0
          %1174 = vmatpush1.msra.mxu0 0.0
          %1175 = vmatprep.subr.mxu0 0.0
          %1176 = vmatpush1.msra.mxu0 0.0
          %1177 = vmatprep.subr.mxu0 0.0
          %1178 = vmatpush1.msra.mxu0 0.0
          %1179 = vmatprep.subr.mxu0 0.0
          %1180 = vmatpush1.msra.mxu0 0.0
          %1181 = vmatprep.subr.mxu0 0.0
          %1182 = vmatpush1.msra.mxu0 0.0
          %1183 = vmatprep.subr.mxu0 0.0
          %1184 = vmatpush1.msra.mxu0 0.0
          %1185 = vmatprep.subr.mxu0 0.0
          %1186 = vmatpush1.msra.mxu0 0.0
          %1187 = vmatprep.subr.mxu0 0.0
          %1188 = vmatpush1.msra.mxu0 0.0
          %1189 = vmatprep.subr.mxu0 0.0
          %1190 = vmatpush1.msra.mxu0 0.0
          %1191 = vmatprep.subr.mxu0 0.0
          %1192 = vmatpush1.msra.mxu0 0.0
          %1193 = vmatprep.subr.mxu0 0.0
          %1194 = vmatpush1.msra.mxu0 0.0
          %1195 = vmatprep.subr.mxu0 0.0
          %1196 = vmatpush1.msra.mxu0 0.0
          %1197 = vmatprep.subr.mxu0 0.0
          %1198 = vmatpush1.msra.mxu0 0.0
          %1199 = vmatprep.subr.mxu0 0.0
          %1200 = vmatpush1.msra.mxu0 0.0
          %1201 = vmatprep.subr.mxu0 0.0
          %1202 = vmatpush1.msra.mxu0 0.0
          %1203 = vmatprep.subr.mxu0 0.0
          %1204 = vmatpush1.msra.mxu0 0.0
          %1205 = vmatprep.subr.mxu0 0.0
          %1206 = vmatpush1.msra.mxu0 0.0
          %1207 = vmatprep.subr.mxu0 0.0
          %1208 = vmatpush1.msra.mxu0 0.0
          %1209 = vmatprep.subr.mxu0 0.0
          %1210 = vmatpush1.msra.mxu0 0.0
          %1211 = vmatprep.subr.mxu0 0.0
          %1212 = vmatpush1.msra.mxu0 0.0
          %1213 = vmatprep.subr.mxu0 0.0
          %1214 = vmatpush1.msra.mxu0 0.0
          %1215 = vmatprep.subr.mxu0 0.0
          %1216 = vmatpush1.msra.mxu0 0.0
          %1217 = vmatprep.mubr.f32.mxu0 0.0
          %1218 = vmatmul.mubr.f32.gmra.mrb[0].mxu0 %v1151
          %v1219 = vpop.f32.mrb[0].mxu0
          %v1220 = vadd.f32 %v604, %v1219
          %v1221 = vpop.f32.mrb[0].mxu0
          %v1222 = vadd.f32 %v608, %v1221
          %1223 = vdwg.mxu0
          %v1224 = vxor.u32 %v1220, 2147483648
          %v1225 = vmul.f32 %v1224, 1.442695
          %v1226 = vpow.pop %v1225
          %v1227 = vadd.f32 %v1226, 1.0
          %v1228 = vrcp.pop %v1227
          %v1229 = vmul.f32 1.0, %v1228
          %v1230 = vtanh.pop %v1222
          %v1231 = vxor.u32 %v1222, 2147483648
          %v1232 = vmul.f32 %v1231, 1.442695
          %v1233 = vpow.pop %v1232
          %v1234 = vadd.f32 %v1233, 1.0
          %v1235 = vrcp.pop %v1234
          %v1236 = vmul.f32 1.0, %v1235
          %v1237 = vmul.f32 %v1229, %v1066
          %v1238 = vmul.f32 %v1229, %v1230
          %1240 = vrot.lane.b32.xlu0 %v1238, 64
          %v1241 = vpop.permute.xlu0 %1240
          %v1243 = vadd.f32 %v1237, %v1241
          %v1244 = vtanh.pop %v1243
          %v1245 = vmul.f32 %v1236, %v1244
          %1247 = vrot.lane.b32.xlu0 %v1245, 64
          %v1248 = vpop.permute.xlu0 %1247
          %v1249 = vsel %vm717, %v1248, 0
          %1251 = vmatprep.subr.mxu0 0.0
          %1252 = vmatpush1.msra.mxu0 %v586
          %1253 = vmatprep.subr.mxu0 0.0
          %1254 = vmatpush1.msra.mxu0 %v587
          %1255 = vmatprep.subr.mxu0 0.0
          %1256 = vmatpush1.msra.mxu0 %v588
          %1257 = vmatprep.subr.mxu0 0.0
          %1258 = vmatpush1.msra.mxu0 %v589
          %1259 = vmatprep.subr.mxu0 0.0
          %1260 = vmatpush1.msra.mxu0 %v590
          %1261 = vmatprep.subr.mxu0 0.0
          %1262 = vmatpush1.msra.mxu0 %v591
          %1263 = vmatprep.subr.mxu0 0.0
          %1264 = vmatpush1.msra.mxu0 %v592
          %1265 = vmatprep.subr.mxu0 0.0
          %1266 = vmatpush1.msra.mxu0 %v593
          %1267 = vmatprep.subr.mxu0 0.0
          %1268 = vmatpush1.msra.mxu0 0.0
          %1269 = vmatprep.subr.mxu0 0.0
          %1270 = vmatpush1.msra.mxu0 0.0
          %1271 = vmatprep.subr.mxu0 0.0
          %1272 = vmatpush1.msra.mxu0 0.0
          %1273 = vmatprep.subr.mxu0 0.0
          %1274 = vmatpush1.msra.mxu0 0.0
          %1275 = vmatprep.subr.mxu0 0.0
          %1276 = vmatpush1.msra.mxu0 0.0
          %1277 = vmatprep.subr.mxu0 0.0
          %1278 = vmatpush1.msra.mxu0 0.0
          %1279 = vmatprep.subr.mxu0 0.0
          %1280 = vmatpush1.msra.mxu0 0.0
          %1281 = vmatprep.subr.mxu0 0.0
          %1282 = vmatpush1.msra.mxu0 0.0
          %1283 = vmatprep.subr.mxu0 0.0
          %1284 = vmatpush1.msra.mxu0 0.0
          %1285 = vmatprep.subr.mxu0 0.0
          %1286 = vmatpush1.msra.mxu0 0.0
          %1287 = vmatprep.subr.mxu0 0.0
          %1288 = vmatpush1.msra.mxu0 0.0
          %1289 = vmatprep.subr.mxu0 0.0
          %1290 = vmatpush1.msra.mxu0 0.0
          %1291 = vmatprep.subr.mxu0 0.0
          %1292 = vmatpush1.msra.mxu0 0.0
          %1293 = vmatprep.subr.mxu0 0.0
          %1294 = vmatpush1.msra.mxu0 0.0
          %1295 = vmatprep.subr.mxu0 0.0
          %1296 = vmatpush1.msra.mxu0 0.0
          %1297 = vmatprep.subr.mxu0 0.0
          %1298 = vmatpush1.msra.mxu0 0.0
          %1299 = vmatprep.subr.mxu0 0.0
          %1300 = vmatpush1.msra.mxu0 0.0
          %1301 = vmatprep.subr.mxu0 0.0
          %1302 = vmatpush1.msra.mxu0 0.0
          %1303 = vmatprep.subr.mxu0 0.0
          %1304 = vmatpush1.msra.mxu0 0.0
          %1305 = vmatprep.subr.mxu0 0.0
          %1306 = vmatpush1.msra.mxu0 0.0
          %1307 = vmatprep.subr.mxu0 0.0
          %1308 = vmatpush1.msra.mxu0 0.0
          %1309 = vmatprep.subr.mxu0 0.0
          %1310 = vmatpush1.msra.mxu0 0.0
          %1311 = vmatprep.subr.mxu0 0.0
          %1312 = vmatpush1.msra.mxu0 0.0
          %1313 = vmatprep.subr.mxu0 0.0
          %1314 = vmatpush1.msra.mxu0 0.0
          %1315 = vmatprep.mubr.f32.mxu0 0.0
          %1316 = vmatmul.mubr.f32.gmra.mrb[0].mxu0 %v1249
          %v1317 = vpop.f32.mrb[0].mxu0
          %v1318 = vadd.f32 %v712, %v1317
          %v1319 = vpop.f32.mrb[0].mxu0
          %1320 = vdwg.mxu0
          %s1321 = scalar_lea.vmem %s10, 6
          %1322 = vst.msk [vmem:[%s1321] sm:$0x3] %vm790, %v1318
        $region76: #{simple_rnn_forward.1} parent=59 // pred_fallthru
          _
        // Predicated region
        $region77: #{simple_rnn_forward.1} parent=59 // pred_check
          %p1323 = pneg %p258
        $region78: #{simple_rnn_forward.1} parent=59 // pred_check_branch
          %1325 = sbr.rel (%p1323) target = $region80
        $region79: #{simple_rnn_forward.1} parent=59 // pred_region
          _
        $region80: #{simple_rnn_forward.1} parent=59 // pred_fallthru
          _
        // Predicated region
        $region81: #{simple_rnn_forward.1} parent=59 // pred_check
          %p1326 = pneg %p258
        $region82: #{simple_rnn_forward.1} parent=59 // pred_check_branch
          %1328 = sbr.rel (%p1326) target = $region84
        $region83: #{simple_rnn_forward.1} parent=59 // pred_region
          _
        $region84: #{simple_rnn_forward.1} parent=59 // pred_fallthru
          _
      $region60: #{simple_rnn_forward.1} parent=5 // pred_fallthru
        _
      %p1329 = scmp.le.s32.totalorder 2, %s18
      // Predicated region
      $region85: #{simple_rnn_forward.1} parent=5 // pred_check
        %p1330 = pneg %p1329
      $region86: #{simple_rnn_forward.1} parent=5 // pred_check_branch
        %1332 = sbr.rel (%p1330) target = $region88
      $region87: #{simple_rnn_forward.1} parent=5 // pred_region
        %s1333 = ssub.s32 %s18, 2
      $region88: #{simple_rnn_forward.1} parent=5 // pred_fallthru
        _
    $region6: #{simple_rnn_forward.1} parent=1 // loop_footer
      %s22 = sadd.s32 1, %s18
    $region7: #{simple_rnn_forward.1} parent=1 // loop_footer_branch
      %17 = sbr.rel target = $region3
    $region8: #{simple_rnn_forward.1} parent=1 // loop_exit
      _
    %1334 = vsyncpa [#allocation5], 1
    %s1335 = scalar_lea.sflag [#allocation5], 1
    %1336 = vsyncpa %s1335, 1
    %1337 = vsyncpa [#allocation7], 1

</llo_original>
